<compile_context>
chip_gen: v7x
topology: tpu7x:2x2x1
jax: 0.10.0
libtpu: 0.0.40
codegen_flags: <defaults>
</compile_context>

<pallas_src>
import functools
import math

import jax
import jax.numpy as jnp
from jax.experimental import pallas as pl
from jax.experimental.pallas import tpu as pltpu  # noqa: F401  (no scratch/semaphores needed at this size)

# ---------------- small synthetic BERT config ----------------
VOCAB = 100
TYPE_VOCAB = 2
MAX_POS = 32
HIDDEN = 32
N_HEADS = 2
HEAD_DIM = HIDDEN // N_HEADS
INTERMEDIATE = 64
N_LAYERS = 2
OUTPUT_DIM = 1          # final-head lane-reduce path assumes OUTPUT_DIM == 1
LN_EPS = 1e-12

# ---- layout of the packed "vec" operand (all 1-D params as rows, zero padded) ----
VEC_W = max(3 * HIDDEN, INTERMEDIATE)       # 96 lanes
VEC_EMB_LN_G = 0
VEC_EMB_LN_B = 1
VEC_LAYER0 = 2
VEC_PER_LAYER = 8                           # bqkv, bo, aln_g, aln_b, bi, bf, fln_g, fln_b
VEC_TAIL0 = VEC_LAYER0 + VEC_PER_LAYER * N_LAYERS
VEC_ROWS = VEC_TAIL0 + 3                    # pool_b, ffw, ffb


# ---------------- fused Pallas kernel ----------------
def _bert_fused_kernel(emb_ref, maskb_ref, wqkv_ref, wo_ref, wi_ref, wf_ref,
                       pool_w_ref, vec_ref, out_ref, *, batch, seq):
    """Whole BertDetector forward in one kernel.

    Inputs:
      emb_ref    (B*S, H)              summed word+pos+type embeddings
      maskb_ref  (B, S)                additive attention bias (0 / -10000)
      wqkv_ref   (N_LAYERS, H, 3H)     fused QKV weights
      wo_ref     (N_LAYERS, H, H)      attention output projection
      wi_ref     (N_LAYERS, H, I)      FFN intermediate
      wf_ref     (N_LAYERS, I, H)      FFN output
      pool_w_ref (H, H)                pooler dense
      vec_ref    (VEC_ROWS, VEC_W)     all bias / LayerNorm / head vectors (zero padded rows)
    Output:
      out_ref    (B, OUTPUT_DIM)       detector logits
    """
    scale = 1.0 / math.sqrt(HEAD_DIM)

    def vrow(r, width):
        return vec_ref[r:r + 1, :width]                                   # (1, width)

    def layernorm(h, g, b):
        mean = jnp.mean(h, axis=-1, keepdims=True)
        var = jnp.mean(jnp.square(h - mean), axis=-1, keepdims=True)
        return (h - mean) * jax.lax.rsqrt(var + LN_EPS) * g + b

    # --- embedding LayerNorm ---
    x = layernorm(emb_ref[...].astype(jnp.float32),
                  vrow(VEC_EMB_LN_G, HIDDEN), vrow(VEC_EMB_LN_B, HIDDEN))  # (B*S, H)

    bias = maskb_ref[...].reshape(batch, 1, seq)                           # (B, 1, S)

    # --- encoder layers (statically unrolled) ---
    for l in range(N_LAYERS):
        base = VEC_LAYER0 + VEC_PER_LAYER * l
        bqkv = vrow(base + 0, 3 * HIDDEN)
        bo = vrow(base + 1, HIDDEN)
        aln_g = vrow(base + 2, HIDDEN)
        aln_b = vrow(base + 3, HIDDEN)
        bi = vrow(base + 4, INTERMEDIATE)
        bf = vrow(base + 5, HIDDEN)
        fln_g = vrow(base + 6, HIDDEN)
        fln_b = vrow(base + 7, HIDDEN)

        # fused QKV projection: (B*S, 3H)
        qkv = jnp.dot(x, wqkv_ref[l], preferred_element_type=jnp.float32) + bqkv

        # attention: batch dim batched in dot_general, heads statically unrolled,
        # context kept entirely in registers (no VMEM scratch).
        ctx_heads = []
        for h in range(N_HEADS):
            q_h = qkv[:, h * HEAD_DIM:(h + 1) * HEAD_DIM].reshape(batch, seq, HEAD_DIM)
            k_h = qkv[:, HIDDEN + h * HEAD_DIM:
                      HIDDEN + (h + 1) * HEAD_DIM].reshape(batch, seq, HEAD_DIM)
            v_h = qkv[:, 2 * HIDDEN + h * HEAD_DIM:
                      2 * HIDDEN + (h + 1) * HEAD_DIM].reshape(batch, seq, HEAD_DIM)

            s = jax.lax.dot_general(q_h, k_h, (((2,), (2,)), ((0,), (0,))),
                                    preferred_element_type=jnp.float32) * scale + bias  # (B,S,S)
            s = s - jnp.max(s, axis=-1, keepdims=True)
            p = jnp.exp(s)
            p = p * pl.reciprocal(jnp.sum(p, axis=-1, keepdims=True), approx=True)

            ctx_h = jax.lax.dot_general(p, v_h, (((2,), (1,)), ((0,), (0,))),
                                        preferred_element_type=jnp.float32)             # (B,S,D)
            ctx_heads.append(ctx_h.reshape(batch * seq, HEAD_DIM))
        ctx = jnp.concatenate(ctx_heads, axis=-1)                                        # (B*S,H)

        # attention output projection + residual + LayerNorm
        attn_out = jnp.dot(ctx, wo_ref[l], preferred_element_type=jnp.float32) + bo
        x = layernorm(x + attn_out, aln_g, aln_b)

        # feed-forward + residual + LayerNorm
        inter = jnp.dot(x, wi_ref[l], preferred_element_type=jnp.float32) + bi
        # TODO(synk): HF BERT uses exact erf-GELU; tanh approximation used here.
        inter = jax.nn.gelu(inter, approximate=True)
        ffn_out = jnp.dot(inter, wf_ref[l], preferred_element_type=jnp.float32) + bf
        x = layernorm(x + ffn_out, fln_g, fln_b)

    # --- pooler (tanh linear on [CLS]) + dropout(eval: identity) + final head, batched ---
    # TODO(synk): training-mode dropout RNG not implemented (module evaluated in eval mode).
    pool_b = vrow(VEC_TAIL0 + 0, HIDDEN)
    ffw = vrow(VEC_TAIL0 + 1, HIDDEN)                     # ff.weight row (OUTPUT_DIM == 1)
    ffb = vec_ref[VEC_TAIL0 + 2:VEC_TAIL0 + 3, 0:1]       # (1, 1)

    cls = x.reshape(batch, seq, HIDDEN)[:, 0, :]                                         # (B, H)
    pooled = jnp.tanh(
        jnp.dot(cls, pool_w_ref[...], preferred_element_type=jnp.float32) + pool_b)      # (B, H)
    logits = jnp.sum(pooled * ffw, axis=-1, keepdims=True) + ffb                         # (B, 1)
    out_ref[...] = logits.astype(out_ref.dtype)


# ---------------- parameter init (deterministic, synthetic) ----------------
def init_params(key):
    keys = iter(jax.random.split(key, 64))

    def nrm(shape):
        return (0.02 * jax.random.normal(next(keys), shape)).astype(jnp.float32)

    def zeros(shape):
        return jnp.zeros(shape, jnp.float32)

    def ones(shape):
        return jnp.ones(shape, jnp.float32)

    layers = []
    for _ in range(N_LAYERS):
        layers.append(dict(
            wq=nrm((HIDDEN, HIDDEN)), bq=zeros((HIDDEN,)),
            wk=nrm((HIDDEN, HIDDEN)), bk=zeros((HIDDEN,)),
            wv=nrm((HIDDEN, HIDDEN)), bv=zeros((HIDDEN,)),
            wo=nrm((HIDDEN, HIDDEN)), bo=zeros((HIDDEN,)),
            attn_ln_g=ones((HIDDEN,)), attn_ln_b=zeros((HIDDEN,)),
            wi=nrm((HIDDEN, INTERMEDIATE)), bi=zeros((INTERMEDIATE,)),
            wf=nrm((INTERMEDIATE, HIDDEN)), bf=zeros((HIDDEN,)),
            ffn_ln_g=ones((HIDDEN,)), ffn_ln_b=zeros((HIDDEN,)),
        ))

    return dict(
        word_emb=nrm((VOCAB, HIDDEN)),
        pos_emb=nrm((MAX_POS, HIDDEN)),
        type_emb=nrm((TYPE_VOCAB, HIDDEN)),
        emb_ln_g=ones((HIDDEN,)), emb_ln_b=zeros((HIDDEN,)),
        layers=layers,
        pool_w=nrm((HIDDEN, HIDDEN)), pool_b=zeros((HIDDEN,)),
        ff_w=nrm((HIDDEN, OUTPUT_DIM)), ff_b=zeros((OUTPUT_DIM,)),
    )


# ---------------- one-time weight packing (outside the jitted forward) ----------------
def pack_params(params):
    # TODO(synk): final-head lane-reduce path assumes OUTPUT_DIM == 1.
    assert OUTPUT_DIM == 1

    wqkv = jnp.stack([jnp.concatenate([l["wq"], l["wk"], l["wv"]], axis=1)
                      for l in params["layers"]])                   # (L, H, 3H)
    wo = jnp.stack([l["wo"] for l in params["layers"]])              # (L, H, H)
    wi = jnp.stack([l["wi"] for l in params["layers"]])              # (L, H, I)
    wf = jnp.stack([l["wf"] for l in params["layers"]])              # (L, I, H)

    def row(v):
        v = jnp.asarray(v, jnp.float32).reshape(-1)
        return jnp.pad(v, (0, VEC_W - v.shape[0]))

    rows = [row(params["emb_ln_g"]), row(params["emb_ln_b"])]
    for l in params["layers"]:
        rows += [row(jnp.concatenate([l["bq"], l["bk"], l["bv"]])),
                 row(l["bo"]), row(l["attn_ln_g"]), row(l["attn_ln_b"]),
                 row(l["bi"]), row(l["bf"]), row(l["ffn_ln_g"]), row(l["ffn_ln_b"])]
    rows += [row(params["pool_b"]), row(params["ff_w"][:, 0]), row(params["ff_b"])]
    vec = jnp.stack(rows)                                            # (VEC_ROWS, VEC_W)
    assert vec.shape == (VEC_ROWS, VEC_W)

    return dict(
        word_emb=params["word_emb"], pos_emb=params["pos_emb"], type_emb=params["type_emb"],
        wqkv=wqkv, wo=wo, wi=wi, wf=wf, pool_w=params["pool_w"], vec=vec)


# ---------------- forward pass (single fused pallas_call, 8 operands) ----------------
def bert_detector_forward(packed, input_ids, attention_mask):
    B, S = input_ids.shape

    # embedding gathers are plain-JAX glue (token_type_ids hard-coded to 0)
    word = packed["word_emb"][input_ids]                     # (B, S, H)
    pos = packed["pos_emb"][:S][None, :, :]                  # (1, S, H)
    tok = packed["type_emb"][0][None, None, :]               # (1, 1, H)
    emb = (word + pos + tok).reshape(B * S, HIDDEN).astype(jnp.float32)

    # additive attention-mask bias, lane-dense (B, S)
    mask_bias = (1.0 - attention_mask.astype(jnp.float32)) * -10000.0

    kernel = functools.partial(_bert_fused_kernel, batch=B, seq=S)
    # NOTE: single-shot grid=() kernel; all weights VMEM-resident (~100 KB << VMEM on
    # v5e/v6e/v7x). A "parallel" batch grid axis only pays off on v7x at much larger B.
    logits = pl.pallas_call(
        kernel,
        out_shape=jax.ShapeDtypeStruct((B, OUTPUT_DIM), jnp.float32),
    )(emb, mask_bias, packed["wqkv"], packed["wo"], packed["wi"], packed["wf"],
      packed["pool_w"], packed["vec"])
    return logits


if __name__ == "__main__":
    key = jax.random.PRNGKey(0)
    k_params, k_ids = jax.random.split(key)

    B, S = 2, 8
    params = init_params(k_params)
    packed = pack_params(params)            # weight packing done once, outside jit
    input_ids = jax.random.randint(k_ids, (B, S), 0, VOCAB, dtype=jnp.int32)
    attention_mask = jnp.array(
        [[1, 1, 1, 1, 1, 1, 1, 1],
         [1, 1, 1, 1, 1, 1, 0, 0]], dtype=jnp.int32)

    forward = jax.jit(bert_detector_forward)
    out = forward(packed, input_ids, attention_mask)
    out = jax.block_until_ready(out)
    assert out.shape == (B, OUTPUT_DIM)
    assert bool(jnp.all(jnp.isfinite(out)))
    print("KERNEL_OK")
</pallas_src>

<mosaic_0001>
module attributes {stable_mosaic.version = 11 : i64} {
  func.func @_bert_fused_kernel(%arg0: memref<16x32xf32, #tpu.memory_space<vmem>>, %arg1: memref<2x8xf32, #tpu.memory_space<vmem>>, %arg2: memref<2x32x96xf32, #tpu.memory_space<vmem>>, %arg3: memref<2x32x32xf32, #tpu.memory_space<vmem>>, %arg4: memref<2x32x64xf32, #tpu.memory_space<vmem>>, %arg5: memref<2x64x32xf32, #tpu.memory_space<vmem>>, %arg6: memref<32x32xf32, #tpu.memory_space<vmem>>, %arg7: memref<21x96xf32, #tpu.memory_space<vmem>>, %arg8: memref<2x1xf32, #tpu.memory_space<vmem>>) attributes {dimension_semantics = [], scalar_prefetch = 0 : i64, scratch_operands = 0 : i64, tpu.core_type = #tpu.core_type<tc>} {
    %c0 = arith.constant 0 : index
    %c0_0 = arith.constant 0 : index
    %0 = vector.load %arg0[%c0, %c0_0] : memref<16x32xf32, #tpu.memory_space<vmem>>, vector<16x32xf32>
    %c0_1 = arith.constant 0 : index
    %c0_2 = arith.constant 0 : index
    %1 = vector.load %arg7[%c0_1, %c0_2] : memref<21x96xf32, #tpu.memory_space<vmem>>, vector<1x32xf32>
    %c1 = arith.constant 1 : index
    %c0_3 = arith.constant 0 : index
    %2 = vector.load %arg7[%c1, %c0_3] : memref<21x96xf32, #tpu.memory_space<vmem>>, vector<1x32xf32>
    %cst = arith.constant dense<0.000000e+00> : vector<16xf32>
    %3 = vector.multi_reduction <add>, %0, %cst [1] : vector<16x32xf32> to vector<16xf32>
    %4 = vector.shape_cast %3 : vector<16xf32> to vector<16x1xf32>
    %cst_4 = arith.constant 3.200000e+01 : f32
    %5 = vector.broadcast %cst_4 : f32 to vector<16x1xf32>
    %6 = arith.divf %4, %5 : vector<16x1xf32>
    %7 = vector.broadcast %6 : vector<16x1xf32> to vector<16x32xf32>
    %8 = arith.subf %0, %7 : vector<16x32xf32>
    %9 = arith.mulf %8, %8 : vector<16x32xf32>
    %cst_5 = arith.constant dense<0.000000e+00> : vector<16xf32>
    %10 = vector.multi_reduction <add>, %9, %cst_5 [1] : vector<16x32xf32> to vector<16xf32>
    %11 = vector.shape_cast %10 : vector<16xf32> to vector<16x1xf32>
    %cst_6 = arith.constant 3.200000e+01 : f32
    %12 = vector.broadcast %cst_6 : f32 to vector<16x1xf32>
    %13 = arith.divf %11, %12 : vector<16x1xf32>
    %14 = vector.broadcast %6 : vector<16x1xf32> to vector<16x32xf32>
    %15 = arith.subf %0, %14 : vector<16x32xf32>
    %cst_7 = arith.constant 9.99999996E-13 : f32
    %16 = vector.broadcast %cst_7 : f32 to vector<16x1xf32>
    %17 = arith.addf %13, %16 : vector<16x1xf32>
    %18 = math.rsqrt %17 : vector<16x1xf32>
    %19 = vector.broadcast %18 : vector<16x1xf32> to vector<16x32xf32>
    %20 = arith.mulf %15, %19 : vector<16x32xf32>
    %21 = vector.broadcast %1 : vector<1x32xf32> to vector<16x32xf32>
    %22 = arith.mulf %20, %21 : vector<16x32xf32>
    %23 = vector.broadcast %2 : vector<1x32xf32> to vector<16x32xf32>
    %24 = arith.addf %22, %23 : vector<16x32xf32>
    %c0_8 = arith.constant 0 : index
    %c0_9 = arith.constant 0 : index
    %25 = vector.load %arg1[%c0_8, %c0_9] : memref<2x8xf32, #tpu.memory_space<vmem>>, vector<2x8xf32>
    %26 = vector.shape_cast %25 : vector<2x8xf32> to vector<2x1x8xf32>
    %c2 = arith.constant 2 : index
    %c0_10 = arith.constant 0 : index
    %27 = vector.load %arg7[%c2, %c0_10] : memref<21x96xf32, #tpu.memory_space<vmem>>, vector<1x96xf32>
    %c3 = arith.constant 3 : index
    %c0_11 = arith.constant 0 : index
    %28 = vector.load %arg7[%c3, %c0_11] : memref<21x96xf32, #tpu.memory_space<vmem>>, vector<1x32xf32>
    %c4 = arith.constant 4 : index
    %c0_12 = arith.constant 0 : index
    %29 = vector.load %arg7[%c4, %c0_12] : memref<21x96xf32, #tpu.memory_space<vmem>>, vector<1x32xf32>
    %c5 = arith.constant 5 : index
    %c0_13 = arith.constant 0 : index
    %30 = vector.load %arg7[%c5, %c0_13] : memref<21x96xf32, #tpu.memory_space<vmem>>, vector<1x32xf32>
    %c6 = arith.constant 6 : index
    %c0_14 = arith.constant 0 : index
    %31 = vector.load %arg7[%c6, %c0_14] : memref<21x96xf32, #tpu.memory_space<vmem>>, vector<1x64xf32>
    %c7 = arith.constant 7 : index
    %c0_15 = arith.constant 0 : index
    %32 = vector.load %arg7[%c7, %c0_15] : memref<21x96xf32, #tpu.memory_space<vmem>>, vector<1x32xf32>
    %c8 = arith.constant 8 : index
    %c0_16 = arith.constant 0 : index
    %33 = vector.load %arg7[%c8, %c0_16] : memref<21x96xf32, #tpu.memory_space<vmem>>, vector<1x32xf32>
    %c9 = arith.constant 9 : index
    %c0_17 = arith.constant 0 : index
    %34 = vector.load %arg7[%c9, %c0_17] : memref<21x96xf32, #tpu.memory_space<vmem>>, vector<1x32xf32>
    %c0_18 = arith.constant 0 : index
    %c0_19 = arith.constant 0 : index
    %c0_20 = arith.constant 0 : index
    %35 = vector.load %arg2[%c0_18, %c0_19, %c0_20] : memref<2x32x96xf32, #tpu.memory_space<vmem>>, vector<1x32x96xf32>
    %36 = vector.shape_cast %35 : vector<1x32x96xf32> to vector<32x96xf32>
    %cst_21 = arith.constant dense<0.000000e+00> : vector<16x96xf32>
    %37 = tpu.matmul %24, %36, %cst_21 {dimension_numbers = #tpu.dot_dimension_numbers<[1], [0], [0], [1], [0, 0, 1, 1], [], []>} : vector<16x32xf32>, vector<32x96xf32>, vector<16x96xf32> -> vector<16x96xf32>
    %38 = vector.broadcast %27 : vector<1x96xf32> to vector<16x96xf32>
    %39 = arith.addf %37, %38 : vector<16x96xf32>
    %40 = vector.extract_strided_slice %39 {offsets = [0, 0], sizes = [16, 16], strides = [1, 1]} : vector<16x96xf32> to vector<16x16xf32>
    %41 = vector.shape_cast %40 : vector<16x16xf32> to vector<2x8x16xf32>
    %42 = vector.extract_strided_slice %39 {offsets = [0, 32], sizes = [16, 16], strides = [1, 1]} : vector<16x96xf32> to vector<16x16xf32>
    %43 = vector.shape_cast %42 : vector<16x16xf32> to vector<2x8x16xf32>
    %44 = vector.extract_strided_slice %39 {offsets = [0, 64], sizes = [16, 16], strides = [1, 1]} : vector<16x96xf32> to vector<16x16xf32>
    %45 = vector.shape_cast %44 : vector<16x16xf32> to vector<2x8x16xf32>
    %cst_22 = arith.constant dense<0.000000e+00> : vector<2x8x8xf32>
    %46 = tpu.matmul %41, %43, %cst_22 {dimension_numbers = #tpu.dot_dimension_numbers<[2], [2], [1], [1], [0, 0, 0, 1, 1, 1], [0], [0]>} : vector<2x8x16xf32>, vector<2x8x16xf32>, vector<2x8x8xf32> -> vector<2x8x8xf32>
    %cst_23 = arith.constant 2.500000e-01 : f32
    %47 = vector.broadcast %cst_23 : f32 to vector<2x8x8xf32>
    %48 = arith.mulf %46, %47 : vector<2x8x8xf32>
    %49 = vector.broadcast %26 : vector<2x1x8xf32> to vector<2x8x8xf32>
    %50 = arith.addf %48, %49 : vector<2x8x8xf32>
    %cst_24 = arith.constant dense<0xFF800000> : vector<2x8xf32>
    %51 = vector.multi_reduction <maximumf>, %50, %cst_24 [2] : vector<2x8x8xf32> to vector<2x8xf32>
    %52 = vector.shape_cast %51 : vector<2x8xf32> to vector<2x8x1xf32>
    %53 = vector.broadcast %52 : vector<2x8x1xf32> to vector<2x8x8xf32>
    %54 = arith.subf %50, %53 : vector<2x8x8xf32>
    %55 = math.exp %54 : vector<2x8x8xf32>
    %cst_25 = arith.constant dense<0.000000e+00> : vector<2x8xf32>
    %56 = vector.multi_reduction <add>, %55, %cst_25 [2] : vector<2x8x8xf32> to vector<2x8xf32>
    %57 = vector.shape_cast %56 : vector<2x8xf32> to vector<2x8x1xf32>
    %58 = tpu.reciprocal %57 {approx = true} : vector<2x8x1xf32> -> vector<2x8x1xf32>
    %59 = vector.broadcast %58 : vector<2x8x1xf32> to vector<2x8x8xf32>
    %60 = arith.mulf %55, %59 : vector<2x8x8xf32>
    %cst_26 = arith.constant dense<0.000000e+00> : vector<2x8x16xf32>
    %61 = tpu.matmul %60, %45, %cst_26 {dimension_numbers = #tpu.dot_dimension_numbers<[2], [1], [1], [2], [0, 0, 0, 1, 1, 2], [0], [0]>} : vector<2x8x8xf32>, vector<2x8x16xf32>, vector<2x8x16xf32> -> vector<2x8x16xf32>
    %62 = vector.shape_cast %61 : vector<2x8x16xf32> to vector<16x16xf32>
    %63 = vector.extract_strided_slice %39 {offsets = [0, 16], sizes = [16, 16], strides = [1, 1]} : vector<16x96xf32> to vector<16x16xf32>
    %64 = vector.shape_cast %63 : vector<16x16xf32> to vector<2x8x16xf32>
    %65 = vector.extract_strided_slice %39 {offsets = [0, 48], sizes = [16, 16], strides = [1, 1]} : vector<16x96xf32> to vector<16x16xf32>
    %66 = vector.shape_cast %65 : vector<16x16xf32> to vector<2x8x16xf32>
    %67 = vector.extract_strided_slice %39 {offsets = [0, 80], sizes = [16, 16], strides = [1, 1]} : vector<16x96xf32> to vector<16x16xf32>
    %68 = vector.shape_cast %67 : vector<16x16xf32> to vector<2x8x16xf32>
    %cst_27 = arith.constant dense<0.000000e+00> : vector<2x8x8xf32>
    %69 = tpu.matmul %64, %66, %cst_27 {dimension_numbers = #tpu.dot_dimension_numbers<[2], [2], [1], [1], [0, 0, 0, 1, 1, 1], [0], [0]>} : vector<2x8x16xf32>, vector<2x8x16xf32>, vector<2x8x8xf32> -> vector<2x8x8xf32>
    %cst_28 = arith.constant 2.500000e-01 : f32
    %70 = vector.broadcast %cst_28 : f32 to vector<2x8x8xf32>
    %71 = arith.mulf %69, %70 : vector<2x8x8xf32>
    %72 = vector.broadcast %26 : vector<2x1x8xf32> to vector<2x8x8xf32>
    %73 = arith.addf %71, %72 : vector<2x8x8xf32>
    %cst_29 = arith.constant dense<0xFF800000> : vector<2x8xf32>
    %74 = vector.multi_reduction <maximumf>, %73, %cst_29 [2] : vector<2x8x8xf32> to vector<2x8xf32>
    %75 = vector.shape_cast %74 : vector<2x8xf32> to vector<2x8x1xf32>
    %76 = vector.broadcast %75 : vector<2x8x1xf32> to vector<2x8x8xf32>
    %77 = arith.subf %73, %76 : vector<2x8x8xf32>
    %78 = math.exp %77 : vector<2x8x8xf32>
    %cst_30 = arith.constant dense<0.000000e+00> : vector<2x8xf32>
    %79 = vector.multi_reduction <add>, %78, %cst_30 [2] : vector<2x8x8xf32> to vector<2x8xf32>
    %80 = vector.shape_cast %79 : vector<2x8xf32> to vector<2x8x1xf32>
    %81 = tpu.reciprocal %80 {approx = true} : vector<2x8x1xf32> -> vector<2x8x1xf32>
    %82 = vector.broadcast %81 : vector<2x8x1xf32> to vector<2x8x8xf32>
    %83 = arith.mulf %78, %82 : vector<2x8x8xf32>
    %cst_31 = arith.constant dense<0.000000e+00> : vector<2x8x16xf32>
    %84 = tpu.matmul %83, %68, %cst_31 {dimension_numbers = #tpu.dot_dimension_numbers<[2], [1], [1], [2], [0, 0, 0, 1, 1, 2], [0], [0]>} : vector<2x8x8xf32>, vector<2x8x16xf32>, vector<2x8x16xf32> -> vector<2x8x16xf32>
    %85 = vector.shape_cast %84 : vector<2x8x16xf32> to vector<16x16xf32>
    %86 = tpu.concatenate %62, %85 in 1 : vector<16x16xf32>, vector<16x16xf32> -> vector<16x32xf32>
    %c0_32 = arith.constant 0 : index
    %c0_33 = arith.constant 0 : index
    %c0_34 = arith.constant 0 : index
    %87 = vector.load %arg3[%c0_32, %c0_33, %c0_34] : memref<2x32x32xf32, #tpu.memory_space<vmem>>, vector<1x32x32xf32>
    %88 = vector.shape_cast %87 : vector<1x32x32xf32> to vector<32x32xf32>
    %cst_35 = arith.constant dense<0.000000e+00> : vector<16x32xf32>
    %89 = tpu.matmul %86, %88, %cst_35 {dimension_numbers = #tpu.dot_dimension_numbers<[1], [0], [0], [1], [0, 0, 1, 1], [], []>} : vector<16x32xf32>, vector<32x32xf32>, vector<16x32xf32> -> vector<16x32xf32>
    %90 = vector.broadcast %28 : vector<1x32xf32> to vector<16x32xf32>
    %91 = arith.addf %89, %90 : vector<16x32xf32>
    %92 = arith.addf %24, %91 : vector<16x32xf32>
    %cst_36 = arith.constant dense<0.000000e+00> : vector<16xf32>
    %93 = vector.multi_reduction <add>, %92, %cst_36 [1] : vector<16x32xf32> to vector<16xf32>
    %94 = vector.shape_cast %93 : vector<16xf32> to vector<16x1xf32>
    %cst_37 = arith.constant 3.200000e+01 : f32
    %95 = vector.broadcast %cst_37 : f32 to vector<16x1xf32>
    %96 = arith.divf %94, %95 : vector<16x1xf32>
    %97 = vector.broadcast %96 : vector<16x1xf32> to vector<16x32xf32>
    %98 = arith.subf %92, %97 : vector<16x32xf32>
    %99 = arith.mulf %98, %98 : vector<16x32xf32>
    %cst_38 = arith.constant dense<0.000000e+00> : vector<16xf32>
    %100 = vector.multi_reduction <add>, %99, %cst_38 [1] : vector<16x32xf32> to vector<16xf32>
    %101 = vector.shape_cast %100 : vector<16xf32> to vector<16x1xf32>
    %cst_39 = arith.constant 3.200000e+01 : f32
    %102 = vector.broadcast %cst_39 : f32 to vector<16x1xf32>
    %103 = arith.divf %101, %102 : vector<16x1xf32>
    %104 = vector.broadcast %96 : vector<16x1xf32> to vector<16x32xf32>
    %105 = arith.subf %92, %104 : vector<16x32xf32>
    %cst_40 = arith.constant 9.99999996E-13 : f32
    %106 = vector.broadcast %cst_40 : f32 to vector<16x1xf32>
    %107 = arith.addf %103, %106 : vector<16x1xf32>
    %108 = math.rsqrt %107 : vector<16x1xf32>
    %109 = vector.broadcast %108 : vector<16x1xf32> to vector<16x32xf32>
    %110 = arith.mulf %105, %109 : vector<16x32xf32>
    %111 = vector.broadcast %29 : vector<1x32xf32> to vector<16x32xf32>
    %112 = arith.mulf %110, %111 : vector<16x32xf32>
    %113 = vector.broadcast %30 : vector<1x32xf32> to vector<16x32xf32>
    %114 = arith.addf %112, %113 : vector<16x32xf32>
    %c0_41 = arith.constant 0 : index
    %c0_42 = arith.constant 0 : index
    %c0_43 = arith.constant 0 : index
    %115 = vector.load %arg4[%c0_41, %c0_42, %c0_43] : memref<2x32x64xf32, #tpu.memory_space<vmem>>, vector<1x32x64xf32>
    %116 = vector.shape_cast %115 : vector<1x32x64xf32> to vector<32x64xf32>
    %cst_44 = arith.constant dense<0.000000e+00> : vector<16x64xf32>
    %117 = tpu.matmul %114, %116, %cst_44 {dimension_numbers = #tpu.dot_dimension_numbers<[1], [0], [0], [1], [0, 0, 1, 1], [], []>} : vector<16x32xf32>, vector<32x64xf32>, vector<16x64xf32> -> vector<16x64xf32>
    %118 = vector.broadcast %31 : vector<1x64xf32> to vector<16x64xf32>
    %119 = arith.addf %117, %118 : vector<16x64xf32>
    %120 = arith.mulf %119, %119 : vector<16x64xf32>
    %121 = arith.mulf %119, %120 : vector<16x64xf32>
    %cst_45 = arith.constant 4.471500e-02 : f32
    %122 = vector.broadcast %cst_45 : f32 to vector<16x64xf32>
    %123 = arith.mulf %122, %121 : vector<16x64xf32>
    %124 = arith.addf %119, %123 : vector<16x64xf32>
    %cst_46 = arith.constant 0.797884583 : f32
    %125 = vector.broadcast %cst_46 : f32 to vector<16x64xf32>
    %126 = arith.mulf %125, %124 : vector<16x64xf32>
    %127 = math.tanh %126 : vector<16x64xf32>
    %cst_47 = arith.constant 1.000000e+00 : f32
    %128 = vector.broadcast %cst_47 : f32 to vector<16x64xf32>
    %129 = arith.addf %128, %127 : vector<16x64xf32>
    %cst_48 = arith.constant 5.000000e-01 : f32
    %130 = vector.broadcast %cst_48 : f32 to vector<16x64xf32>
    %131 = arith.mulf %130, %129 : vector<16x64xf32>
    %132 = arith.mulf %119, %131 : vector<16x64xf32>
    %c0_49 = arith.constant 0 : index
    %c0_50 = arith.constant 0 : index
    %c0_51 = arith.constant 0 : index
    %133 = vector.load %arg5[%c0_49, %c0_50, %c0_51] : memref<2x64x32xf32, #tpu.memory_space<vmem>>, vector<1x64x32xf32>
    %134 = vector.shape_cast %133 : vector<1x64x32xf32> to vector<64x32xf32>
    %cst_52 = arith.constant dense<0.000000e+00> : vector<16x32xf32>
    %135 = tpu.matmul %132, %134, %cst_52 {dimension_numbers = #tpu.dot_dimension_numbers<[1], [0], [0], [1], [0, 0, 1, 1], [], []>} : vector<16x64xf32>, vector<64x32xf32>, vector<16x32xf32> -> vector<16x32xf32>
    %136 = vector.broadcast %32 : vector<1x32xf32> to vector<16x32xf32>
    %137 = arith.addf %135, %136 : vector<16x32xf32>
    %138 = arith.addf %114, %137 : vector<16x32xf32>
    %cst_53 = arith.constant dense<0.000000e+00> : vector<16xf32>
    %139 = vector.multi_reduction <add>, %138, %cst_53 [1] : vector<16x32xf32> to vector<16xf32>
    %140 = vector.shape_cast %139 : vector<16xf32> to vector<16x1xf32>
    %cst_54 = arith.constant 3.200000e+01 : f32
    %141 = vector.broadcast %cst_54 : f32 to vector<16x1xf32>
    %142 = arith.divf %140, %141 : vector<16x1xf32>
    %143 = vector.broadcast %142 : vector<16x1xf32> to vector<16x32xf32>
    %144 = arith.subf %138, %143 : vector<16x32xf32>
    %145 = arith.mulf %144, %144 : vector<16x32xf32>
    %cst_55 = arith.constant dense<0.000000e+00> : vector<16xf32>
    %146 = vector.multi_reduction <add>, %145, %cst_55 [1] : vector<16x32xf32> to vector<16xf32>
    %147 = vector.shape_cast %146 : vector<16xf32> to vector<16x1xf32>
    %cst_56 = arith.constant 3.200000e+01 : f32
    %148 = vector.broadcast %cst_56 : f32 to vector<16x1xf32>
    %149 = arith.divf %147, %148 : vector<16x1xf32>
    %150 = vector.broadcast %142 : vector<16x1xf32> to vector<16x32xf32>
    %151 = arith.subf %138, %150 : vector<16x32xf32>
    %cst_57 = arith.constant 9.99999996E-13 : f32
    %152 = vector.broadcast %cst_57 : f32 to vector<16x1xf32>
    %153 = arith.addf %149, %152 : vector<16x1xf32>
    %154 = math.rsqrt %153 : vector<16x1xf32>
    %155 = vector.broadcast %154 : vector<16x1xf32> to vector<16x32xf32>
    %156 = arith.mulf %151, %155 : vector<16x32xf32>
    %157 = vector.broadcast %33 : vector<1x32xf32> to vector<16x32xf32>
    %158 = arith.mulf %156, %157 : vector<16x32xf32>
    %159 = vector.broadcast %34 : vector<1x32xf32> to vector<16x32xf32>
    %160 = arith.addf %158, %159 : vector<16x32xf32>
    %c10 = arith.constant 10 : index
    %c0_58 = arith.constant 0 : index
    %161 = vector.load %arg7[%c10, %c0_58] : memref<21x96xf32, #tpu.memory_space<vmem>>, vector<1x96xf32>
    %c11 = arith.constant 11 : index
    %c0_59 = arith.constant 0 : index
    %162 = vector.load %arg7[%c11, %c0_59] : memref<21x96xf32, #tpu.memory_space<vmem>>, vector<1x32xf32>
    %c12 = arith.constant 12 : index
    %c0_60 = arith.constant 0 : index
    %163 = vector.load %arg7[%c12, %c0_60] : memref<21x96xf32, #tpu.memory_space<vmem>>, vector<1x32xf32>
    %c13 = arith.constant 13 : index
    %c0_61 = arith.constant 0 : index
    %164 = vector.load %arg7[%c13, %c0_61] : memref<21x96xf32, #tpu.memory_space<vmem>>, vector<1x32xf32>
    %c14 = arith.constant 14 : index
    %c0_62 = arith.constant 0 : index
    %165 = vector.load %arg7[%c14, %c0_62] : memref<21x96xf32, #tpu.memory_space<vmem>>, vector<1x64xf32>
    %c15 = arith.constant 15 : index
    %c0_63 = arith.constant 0 : index
    %166 = vector.load %arg7[%c15, %c0_63] : memref<21x96xf32, #tpu.memory_space<vmem>>, vector<1x32xf32>
    %c16 = arith.constant 16 : index
    %c0_64 = arith.constant 0 : index
    %167 = vector.load %arg7[%c16, %c0_64] : memref<21x96xf32, #tpu.memory_space<vmem>>, vector<1x32xf32>
    %c17 = arith.constant 17 : index
    %c0_65 = arith.constant 0 : index
    %168 = vector.load %arg7[%c17, %c0_65] : memref<21x96xf32, #tpu.memory_space<vmem>>, vector<1x32xf32>
    %c1_66 = arith.constant 1 : index
    %c0_67 = arith.constant 0 : index
    %c0_68 = arith.constant 0 : index
    %169 = vector.load %arg2[%c1_66, %c0_67, %c0_68] : memref<2x32x96xf32, #tpu.memory_space<vmem>>, vector<1x32x96xf32>
    %170 = vector.shape_cast %169 : vector<1x32x96xf32> to vector<32x96xf32>
    %cst_69 = arith.constant dense<0.000000e+00> : vector<16x96xf32>
    %171 = tpu.matmul %160, %170, %cst_69 {dimension_numbers = #tpu.dot_dimension_numbers<[1], [0], [0], [1], [0, 0, 1, 1], [], []>} : vector<16x32xf32>, vector<32x96xf32>, vector<16x96xf32> -> vector<16x96xf32>
    %172 = vector.broadcast %161 : vector<1x96xf32> to vector<16x96xf32>
    %173 = arith.addf %171, %172 : vector<16x96xf32>
    %174 = vector.extract_strided_slice %173 {offsets = [0, 0], sizes = [16, 16], strides = [1, 1]} : vector<16x96xf32> to vector<16x16xf32>
    %175 = vector.shape_cast %174 : vector<16x16xf32> to vector<2x8x16xf32>
    %176 = vector.extract_strided_slice %173 {offsets = [0, 32], sizes = [16, 16], strides = [1, 1]} : vector<16x96xf32> to vector<16x16xf32>
    %177 = vector.shape_cast %176 : vector<16x16xf32> to vector<2x8x16xf32>
    %178 = vector.extract_strided_slice %173 {offsets = [0, 64], sizes = [16, 16], strides = [1, 1]} : vector<16x96xf32> to vector<16x16xf32>
    %179 = vector.shape_cast %178 : vector<16x16xf32> to vector<2x8x16xf32>
    %cst_70 = arith.constant dense<0.000000e+00> : vector<2x8x8xf32>
    %180 = tpu.matmul %175, %177, %cst_70 {dimension_numbers = #tpu.dot_dimension_numbers<[2], [2], [1], [1], [0, 0, 0, 1, 1, 1], [0], [0]>} : vector<2x8x16xf32>, vector<2x8x16xf32>, vector<2x8x8xf32> -> vector<2x8x8xf32>
    %cst_71 = arith.constant 2.500000e-01 : f32
    %181 = vector.broadcast %cst_71 : f32 to vector<2x8x8xf32>
    %182 = arith.mulf %180, %181 : vector<2x8x8xf32>
    %183 = vector.broadcast %26 : vector<2x1x8xf32> to vector<2x8x8xf32>
    %184 = arith.addf %182, %183 : vector<2x8x8xf32>
    %cst_72 = arith.constant dense<0xFF800000> : vector<2x8xf32>
    %185 = vector.multi_reduction <maximumf>, %184, %cst_72 [2] : vector<2x8x8xf32> to vector<2x8xf32>
    %186 = vector.shape_cast %185 : vector<2x8xf32> to vector<2x8x1xf32>
    %187 = vector.broadcast %186 : vector<2x8x1xf32> to vector<2x8x8xf32>
    %188 = arith.subf %184, %187 : vector<2x8x8xf32>
    %189 = math.exp %188 : vector<2x8x8xf32>
    %cst_73 = arith.constant dense<0.000000e+00> : vector<2x8xf32>
    %190 = vector.multi_reduction <add>, %189, %cst_73 [2] : vector<2x8x8xf32> to vector<2x8xf32>
    %191 = vector.shape_cast %190 : vector<2x8xf32> to vector<2x8x1xf32>
    %192 = tpu.reciprocal %191 {approx = true} : vector<2x8x1xf32> -> vector<2x8x1xf32>
    %193 = vector.broadcast %192 : vector<2x8x1xf32> to vector<2x8x8xf32>
    %194 = arith.mulf %189, %193 : vector<2x8x8xf32>
    %cst_74 = arith.constant dense<0.000000e+00> : vector<2x8x16xf32>
    %195 = tpu.matmul %194, %179, %cst_74 {dimension_numbers = #tpu.dot_dimension_numbers<[2], [1], [1], [2], [0, 0, 0, 1, 1, 2], [0], [0]>} : vector<2x8x8xf32>, vector<2x8x16xf32>, vector<2x8x16xf32> -> vector<2x8x16xf32>
    %196 = vector.shape_cast %195 : vector<2x8x16xf32> to vector<16x16xf32>
    %197 = vector.extract_strided_slice %173 {offsets = [0, 16], sizes = [16, 16], strides = [1, 1]} : vector<16x96xf32> to vector<16x16xf32>
    %198 = vector.shape_cast %197 : vector<16x16xf32> to vector<2x8x16xf32>
    %199 = vector.extract_strided_slice %173 {offsets = [0, 48], sizes = [16, 16], strides = [1, 1]} : vector<16x96xf32> to vector<16x16xf32>
    %200 = vector.shape_cast %199 : vector<16x16xf32> to vector<2x8x16xf32>
    %201 = vector.extract_strided_slice %173 {offsets = [0, 80], sizes = [16, 16], strides = [1, 1]} : vector<16x96xf32> to vector<16x16xf32>
    %202 = vector.shape_cast %201 : vector<16x16xf32> to vector<2x8x16xf32>
    %cst_75 = arith.constant dense<0.000000e+00> : vector<2x8x8xf32>
    %203 = tpu.matmul %198, %200, %cst_75 {dimension_numbers = #tpu.dot_dimension_numbers<[2], [2], [1], [1], [0, 0, 0, 1, 1, 1], [0], [0]>} : vector<2x8x16xf32>, vector<2x8x16xf32>, vector<2x8x8xf32> -> vector<2x8x8xf32>
    %cst_76 = arith.constant 2.500000e-01 : f32
    %204 = vector.broadcast %cst_76 : f32 to vector<2x8x8xf32>
    %205 = arith.mulf %203, %204 : vector<2x8x8xf32>
    %206 = vector.broadcast %26 : vector<2x1x8xf32> to vector<2x8x8xf32>
    %207 = arith.addf %205, %206 : vector<2x8x8xf32>
    %cst_77 = arith.constant dense<0xFF800000> : vector<2x8xf32>
    %208 = vector.multi_reduction <maximumf>, %207, %cst_77 [2] : vector<2x8x8xf32> to vector<2x8xf32>
    %209 = vector.shape_cast %208 : vector<2x8xf32> to vector<2x8x1xf32>
    %210 = vector.broadcast %209 : vector<2x8x1xf32> to vector<2x8x8xf32>
    %211 = arith.subf %207, %210 : vector<2x8x8xf32>
    %212 = math.exp %211 : vector<2x8x8xf32>
    %cst_78 = arith.constant dense<0.000000e+00> : vector<2x8xf32>
    %213 = vector.multi_reduction <add>, %212, %cst_78 [2] : vector<2x8x8xf32> to vector<2x8xf32>
    %214 = vector.shape_cast %213 : vector<2x8xf32> to vector<2x8x1xf32>
    %215 = tpu.reciprocal %214 {approx = true} : vector<2x8x1xf32> -> vector<2x8x1xf32>
    %216 = vector.broadcast %215 : vector<2x8x1xf32> to vector<2x8x8xf32>
    %217 = arith.mulf %212, %216 : vector<2x8x8xf32>
    %cst_79 = arith.constant dense<0.000000e+00> : vector<2x8x16xf32>
    %218 = tpu.matmul %217, %202, %cst_79 {dimension_numbers = #tpu.dot_dimension_numbers<[2], [1], [1], [2], [0, 0, 0, 1, 1, 2], [0], [0]>} : vector<2x8x8xf32>, vector<2x8x16xf32>, vector<2x8x16xf32> -> vector<2x8x16xf32>
    %219 = vector.shape_cast %218 : vector<2x8x16xf32> to vector<16x16xf32>
    %220 = tpu.concatenate %196, %219 in 1 : vector<16x16xf32>, vector<16x16xf32> -> vector<16x32xf32>
    %c1_80 = arith.constant 1 : index
    %c0_81 = arith.constant 0 : index
    %c0_82 = arith.constant 0 : index
    %221 = vector.load %arg3[%c1_80, %c0_81, %c0_82] : memref<2x32x32xf32, #tpu.memory_space<vmem>>, vector<1x32x32xf32>
    %222 = vector.shape_cast %221 : vector<1x32x32xf32> to vector<32x32xf32>
    %cst_83 = arith.constant dense<0.000000e+00> : vector<16x32xf32>
    %223 = tpu.matmul %220, %222, %cst_83 {dimension_numbers = #tpu.dot_dimension_numbers<[1], [0], [0], [1], [0, 0, 1, 1], [], []>} : vector<16x32xf32>, vector<32x32xf32>, vector<16x32xf32> -> vector<16x32xf32>
    %224 = vector.broadcast %162 : vector<1x32xf32> to vector<16x32xf32>
    %225 = arith.addf %223, %224 : vector<16x32xf32>
    %226 = arith.addf %160, %225 : vector<16x32xf32>
    %cst_84 = arith.constant dense<0.000000e+00> : vector<16xf32>
    %227 = vector.multi_reduction <add>, %226, %cst_84 [1] : vector<16x32xf32> to vector<16xf32>
    %228 = vector.shape_cast %227 : vector<16xf32> to vector<16x1xf32>
    %cst_85 = arith.constant 3.200000e+01 : f32
    %229 = vector.broadcast %cst_85 : f32 to vector<16x1xf32>
    %230 = arith.divf %228, %229 : vector<16x1xf32>
    %231 = vector.broadcast %230 : vector<16x1xf32> to vector<16x32xf32>
    %232 = arith.subf %226, %231 : vector<16x32xf32>
    %233 = arith.mulf %232, %232 : vector<16x32xf32>
    %cst_86 = arith.constant dense<0.000000e+00> : vector<16xf32>
    %234 = vector.multi_reduction <add>, %233, %cst_86 [1] : vector<16x32xf32> to vector<16xf32>
    %235 = vector.shape_cast %234 : vector<16xf32> to vector<16x1xf32>
    %cst_87 = arith.constant 3.200000e+01 : f32
    %236 = vector.broadcast %cst_87 : f32 to vector<16x1xf32>
    %237 = arith.divf %235, %236 : vector<16x1xf32>
    %238 = vector.broadcast %230 : vector<16x1xf32> to vector<16x32xf32>
    %239 = arith.subf %226, %238 : vector<16x32xf32>
    %cst_88 = arith.constant 9.99999996E-13 : f32
    %240 = vector.broadcast %cst_88 : f32 to vector<16x1xf32>
    %241 = arith.addf %237, %240 : vector<16x1xf32>
    %242 = math.rsqrt %241 : vector<16x1xf32>
    %243 = vector.broadcast %242 : vector<16x1xf32> to vector<16x32xf32>
    %244 = arith.mulf %239, %243 : vector<16x32xf32>
    %245 = vector.broadcast %163 : vector<1x32xf32> to vector<16x32xf32>
    %246 = arith.mulf %244, %245 : vector<16x32xf32>
    %247 = vector.broadcast %164 : vector<1x32xf32> to vector<16x32xf32>
    %248 = arith.addf %246, %247 : vector<16x32xf32>
    %c1_89 = arith.constant 1 : index
    %c0_90 = arith.constant 0 : index
    %c0_91 = arith.constant 0 : index
    %249 = vector.load %arg4[%c1_89, %c0_90, %c0_91] : memref<2x32x64xf32, #tpu.memory_space<vmem>>, vector<1x32x64xf32>
    %250 = vector.shape_cast %249 : vector<1x32x64xf32> to vector<32x64xf32>
    %cst_92 = arith.constant dense<0.000000e+00> : vector<16x64xf32>
    %251 = tpu.matmul %248, %250, %cst_92 {dimension_numbers = #tpu.dot_dimension_numbers<[1], [0], [0], [1], [0, 0, 1, 1], [], []>} : vector<16x32xf32>, vector<32x64xf32>, vector<16x64xf32> -> vector<16x64xf32>
    %252 = vector.broadcast %165 : vector<1x64xf32> to vector<16x64xf32>
    %253 = arith.addf %251, %252 : vector<16x64xf32>
    %254 = arith.mulf %253, %253 : vector<16x64xf32>
    %255 = arith.mulf %253, %254 : vector<16x64xf32>
    %cst_93 = arith.constant 4.471500e-02 : f32
    %256 = vector.broadcast %cst_93 : f32 to vector<16x64xf32>
    %257 = arith.mulf %256, %255 : vector<16x64xf32>
    %258 = arith.addf %253, %257 : vector<16x64xf32>
    %cst_94 = arith.constant 0.797884583 : f32
    %259 = vector.broadcast %cst_94 : f32 to vector<16x64xf32>
    %260 = arith.mulf %259, %258 : vector<16x64xf32>
    %261 = math.tanh %260 : vector<16x64xf32>
    %cst_95 = arith.constant 1.000000e+00 : f32
    %262 = vector.broadcast %cst_95 : f32 to vector<16x64xf32>
    %263 = arith.addf %262, %261 : vector<16x64xf32>
    %cst_96 = arith.constant 5.000000e-01 : f32
    %264 = vector.broadcast %cst_96 : f32 to vector<16x64xf32>
    %265 = arith.mulf %264, %263 : vector<16x64xf32>
    %266 = arith.mulf %253, %265 : vector<16x64xf32>
    %c1_97 = arith.constant 1 : index
    %c0_98 = arith.constant 0 : index
    %c0_99 = arith.constant 0 : index
    %267 = vector.load %arg5[%c1_97, %c0_98, %c0_99] : memref<2x64x32xf32, #tpu.memory_space<vmem>>, vector<1x64x32xf32>
    %268 = vector.shape_cast %267 : vector<1x64x32xf32> to vector<64x32xf32>
    %cst_100 = arith.constant dense<0.000000e+00> : vector<16x32xf32>
    %269 = tpu.matmul %266, %268, %cst_100 {dimension_numbers = #tpu.dot_dimension_numbers<[1], [0], [0], [1], [0, 0, 1, 1], [], []>} : vector<16x64xf32>, vector<64x32xf32>, vector<16x32xf32> -> vector<16x32xf32>
    %270 = vector.broadcast %166 : vector<1x32xf32> to vector<16x32xf32>
    %271 = arith.addf %269, %270 : vector<16x32xf32>
    %272 = arith.addf %248, %271 : vector<16x32xf32>
    %cst_101 = arith.constant dense<0.000000e+00> : vector<16xf32>
    %273 = vector.multi_reduction <add>, %272, %cst_101 [1] : vector<16x32xf32> to vector<16xf32>
    %274 = vector.shape_cast %273 : vector<16xf32> to vector<16x1xf32>
    %cst_102 = arith.constant 3.200000e+01 : f32
    %275 = vector.broadcast %cst_102 : f32 to vector<16x1xf32>
    %276 = arith.divf %274, %275 : vector<16x1xf32>
    %277 = vector.broadcast %276 : vector<16x1xf32> to vector<16x32xf32>
    %278 = arith.subf %272, %277 : vector<16x32xf32>
    %279 = arith.mulf %278, %278 : vector<16x32xf32>
    %cst_103 = arith.constant dense<0.000000e+00> : vector<16xf32>
    %280 = vector.multi_reduction <add>, %279, %cst_103 [1] : vector<16x32xf32> to vector<16xf32>
    %281 = vector.shape_cast %280 : vector<16xf32> to vector<16x1xf32>
    %cst_104 = arith.constant 3.200000e+01 : f32
    %282 = vector.broadcast %cst_104 : f32 to vector<16x1xf32>
    %283 = arith.divf %281, %282 : vector<16x1xf32>
    %284 = vector.broadcast %276 : vector<16x1xf32> to vector<16x32xf32>
    %285 = arith.subf %272, %284 : vector<16x32xf32>
    %cst_105 = arith.constant 9.99999996E-13 : f32
    %286 = vector.broadcast %cst_105 : f32 to vector<16x1xf32>
    %287 = arith.addf %283, %286 : vector<16x1xf32>
    %288 = math.rsqrt %287 : vector<16x1xf32>
    %289 = vector.broadcast %288 : vector<16x1xf32> to vector<16x32xf32>
    %290 = arith.mulf %285, %289 : vector<16x32xf32>
    %291 = vector.broadcast %167 : vector<1x32xf32> to vector<16x32xf32>
    %292 = arith.mulf %290, %291 : vector<16x32xf32>
    %293 = vector.broadcast %168 : vector<1x32xf32> to vector<16x32xf32>
    %294 = arith.addf %292, %293 : vector<16x32xf32>
    %c18 = arith.constant 18 : index
    %c0_106 = arith.constant 0 : index
    %295 = vector.load %arg7[%c18, %c0_106] : memref<21x96xf32, #tpu.memory_space<vmem>>, vector<1x32xf32>
    %c19 = arith.constant 19 : index
    %c0_107 = arith.constant 0 : index
    %296 = vector.load %arg7[%c19, %c0_107] : memref<21x96xf32, #tpu.memory_space<vmem>>, vector<1x32xf32>
    %c20 = arith.constant 20 : index
    %c0_108 = arith.constant 0 : index
    %297 = vector.load %arg7[%c20, %c0_108] : memref<21x96xf32, #tpu.memory_space<vmem>>, vector<1x1xf32>
    %298 = vector.shape_cast %294 : vector<16x32xf32> to vector<2x8x32xf32>
    %299 = vector.extract_strided_slice %298 {offsets = [0, 0, 0], sizes = [2, 1, 32], strides = [1, 1, 1]} : vector<2x8x32xf32> to vector<2x1x32xf32>
    %300 = vector.shape_cast %299 : vector<2x1x32xf32> to vector<2x32xf32>
    %c0_109 = arith.constant 0 : index
    %c0_110 = arith.constant 0 : index
    %301 = vector.load %arg6[%c0_109, %c0_110] : memref<32x32xf32, #tpu.memory_space<vmem>>, vector<32x32xf32>
    %cst_111 = arith.constant dense<0.000000e+00> : vector<2x32xf32>
    %302 = tpu.matmul %300, %301, %cst_111 {dimension_numbers = #tpu.dot_dimension_numbers<[1], [0], [0], [1], [0, 0, 1, 1], [], []>} : vector<2x32xf32>, vector<32x32xf32>, vector<2x32xf32> -> vector<2x32xf32>
    %303 = vector.broadcast %295 : vector<1x32xf32> to vector<2x32xf32>
    %304 = arith.addf %302, %303 : vector<2x32xf32>
    %305 = math.tanh %304 : vector<2x32xf32>
    %306 = vector.broadcast %296 : vector<1x32xf32> to vector<2x32xf32>
    %307 = arith.mulf %305, %306 : vector<2x32xf32>
    %cst_112 = arith.constant dense<0.000000e+00> : vector<2xf32>
    %308 = vector.multi_reduction <add>, %307, %cst_112 [1] : vector<2x32xf32> to vector<2xf32>
    %309 = vector.shape_cast %308 : vector<2xf32> to vector<2x1xf32>
    %310 = vector.broadcast %297 : vector<1x1xf32> to vector<2x1xf32>
    %311 = arith.addf %309, %310 : vector<2x1xf32>
    %c0_113 = arith.constant 0 : index
    %c0_114 = arith.constant 0 : index
    %312 = vector.load %arg8[%c0_113, %c0_114] : memref<2x1xf32, #tpu.memory_space<vmem>>, vector<2x1xf32>
    tpu.vector_store %arg8[%c0_113, %c0_114], %311 {strides = array<i32>} : memref<2x1xf32, #tpu.memory_space<vmem>>, vector<2x1xf32>,
    return
  }
}

</mosaic_0001>

<llo_original>
// kernel: bert_detector_forward.1
$region0: #{bert_detector_forward.1}
  #allocation0 [shape = 'u32[]', space=smem, size = 0x4, offset = 0x4, fixed_abs, tag = 'smem constant byte address 0x4 - core index']
  #allocation1 [shape = 'u32[144,128]{1,0:T(1,128)}', space=vmem, size = 0x12000, scoped, tag = 'internal scratch']
  %s0 = inlined_call_operand.vmem [shape: f32[16,32], index: 0, kind: input, shape index: {}]
  %s1 = inlined_call_operand.vmem [shape: f32[2,8], index: 1, kind: input, shape index: {}]
  %s2 = inlined_call_operand.vmem [shape: f32[2,32,96], index: 2, kind: input, shape index: {}]
  %s3 = inlined_call_operand.vmem [shape: f32[2,32,32], index: 3, kind: input, shape index: {}]
  %s4 = inlined_call_operand.vmem [shape: f32[2,32,64], index: 4, kind: input, shape index: {}]
  %s5 = inlined_call_operand.vmem [shape: f32[2,64,32], index: 5, kind: input, shape index: {}]
  %s6 = inlined_call_operand.vmem [shape: f32[32,32], index: 6, kind: input, shape index: {}]
  %s7 = inlined_call_operand.vmem [shape: f32[21,96], index: 7, kind: input, shape index: {}]
  %s8 = inlined_call_operand.vmem [shape: f32[2,1], index: 8, kind: output, shape index: {}]
  %s9 = sld [smem:[#allocation0]]
  $region42: #{bert_detector_forward.1} parent=0
    _
  %s11 = ssub.s32 1, %s9
  %s12 = scalar_select 0, %s11, %s9
  // Predicated region
  $region2: #{bert_detector_forward.1} parent=0 // pred_check
    _
  $region3: #{bert_detector_forward.1} parent=0 // pred_check_branch
    %14 = sbr.rel (0) target = $region5
  $region4: #{bert_detector_forward.1} parent=0 // pred_region
    _
  $region5: #{bert_detector_forward.1} parent=0 // pred_fallthru
    _
  // Predicated region
  $region6: #{bert_detector_forward.1} parent=0 // pred_check
    _
  $region7: #{bert_detector_forward.1} parent=0 // pred_check_branch
    %16 = sbr.rel (0) target = $region9
  $region8: #{bert_detector_forward.1} parent=0 // pred_region
    _
  $region9: #{bert_detector_forward.1} parent=0 // pred_fallthru
    _
  // Predicated region
  $region10: #{bert_detector_forward.1} parent=0 // pred_check
    _
  $region11: #{bert_detector_forward.1} parent=0 // pred_check_branch
    %18 = sbr.rel (0) target = $region13
  $region12: #{bert_detector_forward.1} parent=0 // pred_region
    _
  $region13: #{bert_detector_forward.1} parent=0 // pred_fallthru
    _
  // Predicated region
  $region14: #{bert_detector_forward.1} parent=0 // pred_check
    _
  $region15: #{bert_detector_forward.1} parent=0 // pred_check_branch
    %20 = sbr.rel (0) target = $region17
  $region16: #{bert_detector_forward.1} parent=0 // pred_region
    _
  $region17: #{bert_detector_forward.1} parent=0 // pred_fallthru
    _
  // Predicated region
  $region18: #{bert_detector_forward.1} parent=0 // pred_check
    _
  $region19: #{bert_detector_forward.1} parent=0 // pred_check_branch
    %22 = sbr.rel (0) target = $region21
  $region20: #{bert_detector_forward.1} parent=0 // pred_region
    _
  $region21: #{bert_detector_forward.1} parent=0 // pred_fallthru
    _
  // Predicated region
  $region22: #{bert_detector_forward.1} parent=0 // pred_check
    _
  $region23: #{bert_detector_forward.1} parent=0 // pred_check_branch
    %24 = sbr.rel (0) target = $region25
  $region24: #{bert_detector_forward.1} parent=0 // pred_region
    _
  $region25: #{bert_detector_forward.1} parent=0 // pred_fallthru
    _
  // Predicated region
  $region26: #{bert_detector_forward.1} parent=0 // pred_check
    _
  $region27: #{bert_detector_forward.1} parent=0 // pred_check_branch
    %26 = sbr.rel (0) target = $region29
  $region28: #{bert_detector_forward.1} parent=0 // pred_region
    _
  $region29: #{bert_detector_forward.1} parent=0 // pred_fallthru
    _
  // Predicated region
  $region30: #{bert_detector_forward.1} parent=0 // pred_check
    _
  $region31: #{bert_detector_forward.1} parent=0 // pred_check_branch
    %28 = sbr.rel (0) target = $region33
  $region32: #{bert_detector_forward.1} parent=0 // pred_region
    _
  $region33: #{bert_detector_forward.1} parent=0 // pred_fallthru
    _
  %v29 = vld [vmem:[%s0] sm:$0xff]
  %v30 = vld [vmem:[%s0 + $0x8] sm:$0xff]
  %v31 = vld [vmem:[%s7] sm:$0x1]
  %v32 = vld [vmem:[%s7 + $0x1] sm:$0x1]
  %vm33 = vcmask 261120
  %v34 = vsel %vm33, %v29, 0.0
  %35 = vadd.xlane.f32.xlu0 %v34
  %v36 = vpop.xlane.xlu0 %35
  %v37 = vsel %vm33, %v30, 0.0
  %38 = vadd.xlane.f32.xlu0 %v37
  %v39 = vpop.xlane.xlu0 %38
  %v40 = vrcp.pop 32.0
  %v41 = vmul.f32 %v36, %v40
  %v42 = vmul.f32 %v39, %v40
  %v43 = vsub.f32 %v29, %v41
  %v44 = vsub.f32 %v30, %v42
  %v45 = vmul.f32 %v43, %v43
  %v46 = vmul.f32 %v44, %v44
  %v47 = vsel %vm33, %v45, 0.0
  %48 = vadd.xlane.f32.xlu0 %v47
  %v49 = vpop.xlane.xlu0 %48
  %v50 = vsel %vm33, %v46, 0.0
  %51 = vadd.xlane.f32.xlu0 %v50
  %v52 = vpop.xlane.xlu0 %51
  %v53 = vmul.f32 %v49, %v40
  %v54 = vmul.f32 %v52, %v40
  %v55 = vadd.f32 %v53, 1e-12
  %v56 = vadd.f32 %v54, 1e-12
  %v57 = vrsqrt.pop %v55
  %v58 = vrsqrt.pop %v56
  %v59 = vmul.f32 %v43, %v57
  %v60 = vmul.f32 %v44, %v58
  %v61 = vlaneseq
  %v62 = vshrl.u32 %v61, 7
  %v63 = vsub.s32 0, %v62
  %v64 = vrot.slane %v31, %v63
  %v65 = vmul.f32 %v59, %v64
  %v66 = vmul.f32 %v60, %v64
  %v67 = vlaneseq
  %v68 = vshrl.u32 %v67, 7
  %v69 = vsub.s32 0, %v68
  %v70 = vrot.slane %v32, %v69
  %v71 = vadd.f32 %v65, %v70
  %v72 = vadd.f32 %v66, %v70
  %v73 = vld [vmem:[%s1] sm:$0x3]
  %v76 = vunpack.c.l.s4 1966171168
  %v77 = vunpack.c.0.s8 %v76
  %v78 = vlaneseq
  %v79 = vshrl.u32 %v78, 7
  %v80 = vsub.s32 %v77, %v79
  %v81 = vrot.slane %v73, %v80
  %v82 = vcombine.high %v81, %v81
  %v84 = vunpack.c.l.s4 1966171168
  %v85 = vunpack.c.0.s8 %v84
  %v86 = vlaneseq
  %v87 = vshrl.u32 %v86, 7
  %v88 = vsub.s32 %v85, %v87
  %v89 = vrot.slane %v81, %v88
  %v91 = vunpack.c.l.s4 1966171168
  %v92 = vunpack.c.0.s8 %v91
  %v93 = vlaneseq
  %v94 = vshrl.u32 %v93, 7
  %v95 = vsub.s32 %v92, %v94
  %v96 = vrot.slane %v82, %v95
  %v97 = vld [vmem:[%s7 + $0x2] sm:$0x1]
  %v98 = vld [vmem:[%s7 + $0x3] sm:$0x1]
  %v99 = vld [vmem:[%s7 + $0x4] sm:$0x1]
  %v100 = vld [vmem:[%s7 + $0x5] sm:$0x1]
  %v101 = vld [vmem:[%s7 + $0x6] sm:$0x1]
  %v102 = vld [vmem:[%s7 + $0x7] sm:$0x1]
  %v103 = vld [vmem:[%s7 + $0x8] sm:$0x1]
  %v104 = vld [vmem:[%s7 + $0x9] sm:$0x1]
  %v105 = vld [vmem:[%s2] sm:$0xff]
  %v106 = vld [vmem:[%s2 + $0x8] sm:$0xff]
  %v107 = vld [vmem:[%s2 + $0x10] sm:$0xff]
  %v108 = vld [vmem:[%s2 + $0x18] sm:$0xff]
  %v109 = vlaneseq
  %v110 = vshrl.u32 %v109, 7
  %v111 = vsub.s32 0, %v110
  %v112 = vrot.slane %v97, %v111
  %v114 = vsel %vm33, %v71, 0
  %v117 = vsel %vm33, %v72, 0
  %119 = vmatprep.subr.mxu0 0.0
  %120 = vmatpush1.msra.mxu0 %v105
  %121 = vmatprep.subr.mxu0 0.0
  %122 = vmatpush1.msra.mxu0 %v106
  %123 = vmatprep.subr.mxu0 0.0
  %124 = vmatpush1.msra.mxu0 %v107
  %125 = vmatprep.subr.mxu0 0.0
  %126 = vmatpush1.msra.mxu0 %v108
  %127 = vmatprep.subr.mxu0 0.0
  %128 = vmatpush1.msra.mxu0 0.0
  %129 = vmatprep.subr.mxu0 0.0
  %130 = vmatpush1.msra.mxu0 0.0
  %131 = vmatprep.subr.mxu0 0.0
  %132 = vmatpush1.msra.mxu0 0.0
  %133 = vmatprep.subr.mxu0 0.0
  %134 = vmatpush1.msra.mxu0 0.0
  %135 = vmatprep.subr.mxu0 0.0
  %136 = vmatpush1.msra.mxu0 0.0
  %137 = vmatprep.subr.mxu0 0.0
  %138 = vmatpush1.msra.mxu0 0.0
  %139 = vmatprep.subr.mxu0 0.0
  %140 = vmatpush1.msra.mxu0 0.0
  %141 = vmatprep.subr.mxu0 0.0
  %142 = vmatpush1.msra.mxu0 0.0
  %143 = vmatprep.subr.mxu0 0.0
  %144 = vmatpush1.msra.mxu0 0.0
  %145 = vmatprep.subr.mxu0 0.0
  %146 = vmatpush1.msra.mxu0 0.0
  %147 = vmatprep.subr.mxu0 0.0
  %148 = vmatpush1.msra.mxu0 0.0
  %149 = vmatprep.subr.mxu0 0.0
  %150 = vmatpush1.msra.mxu0 0.0
  %151 = vmatprep.subr.mxu0 0.0
  %152 = vmatpush1.msra.mxu0 0.0
  %153 = vmatprep.subr.mxu0 0.0
  %154 = vmatpush1.msra.mxu0 0.0
  %155 = vmatprep.subr.mxu0 0.0
  %156 = vmatpush1.msra.mxu0 0.0
  %157 = vmatprep.subr.mxu0 0.0
  %158 = vmatpush1.msra.mxu0 0.0
  %159 = vmatprep.subr.mxu0 0.0
  %160 = vmatpush1.msra.mxu0 0.0
  %161 = vmatprep.subr.mxu0 0.0
  %162 = vmatpush1.msra.mxu0 0.0
  %163 = vmatprep.subr.mxu0 0.0
  %164 = vmatpush1.msra.mxu0 0.0
  %165 = vmatprep.subr.mxu0 0.0
  %166 = vmatpush1.msra.mxu0 0.0
  %167 = vmatprep.subr.mxu0 0.0
  %168 = vmatpush1.msra.mxu0 0.0
  %169 = vmatprep.subr.mxu0 0.0
  %170 = vmatpush1.msra.mxu0 0.0
  %171 = vmatprep.subr.mxu0 0.0
  %172 = vmatpush1.msra.mxu0 0.0
  %173 = vmatprep.subr.mxu0 0.0
  %174 = vmatpush1.msra.mxu0 0.0
  %175 = vmatprep.subr.mxu0 0.0
  %176 = vmatpush1.msra.mxu0 0.0
  %177 = vmatprep.subr.mxu0 0.0
  %178 = vmatpush1.msra.mxu0 0.0
  %179 = vmatprep.subr.mxu0 0.0
  %180 = vmatpush1.msra.mxu0 0.0
  %181 = vmatprep.subr.mxu0 0.0
  %182 = vmatpush1.msra.mxu0 0.0
  %183 = vmatprep.mubr.f32.mxu0 0.0
  %184 = vmatmul.mubr.f32.gmra.mrb[0].mxu0 %v114
  %v185 = vpop.f32.mrb[0].mxu0
  %v186 = vadd.f32 %v112, %v185
  %v187 = vpop.f32.mrb[0].mxu0
  %188 = vmatprep.mubr.f32.mxu0 0.0
  %189 = vmatmul.mubr.f32.gmra.mrb[0].mxu0 %v117
  %v190 = vpop.f32.mrb[0].mxu0
  %v191 = vadd.f32 %v112, %v190
  %v192 = vpop.f32.mrb[0].mxu0
  %193 = vdwg.mxu0
  %195 = vrot.lane.b32.xlu0 %v186, 96
  %v196 = vpop.permute.xlu0 %195
  %vm197 = vcmask 130048
  %v198 = vsel %vm197, %v186, 0
  %v200 = vsel %vm197, %v196, 0
  %202 = vmatprep.subr.mxu0 0.0
  %203 = vmatpush1.xpose.msra.mxu0 %v200
  %204 = vmatprep.subr.mxu0 0.0
  %205 = vmatpush1.xpose.msra.mxu0 0.0
  %206 = vmatprep.subr.mxu0 0.0
  %207 = vmatpush1.xpose.msra.mxu0 0.0
  %208 = vmatprep.subr.mxu0 0.0
  %209 = vmatpush1.xpose.msra.mxu0 0.0
  %210 = vmatprep.subr.mxu0 0.0
  %211 = vmatpush1.xpose.msra.mxu0 0.0
  %212 = vmatprep.subr.mxu0 0.0
  %213 = vmatpush1.xpose.msra.mxu0 0.0
  %214 = vmatprep.subr.mxu0 0.0
  %215 = vmatpush1.xpose.msra.mxu0 0.0
  %216 = vmatprep.subr.mxu0 0.0
  %217 = vmatpush1.xpose.msra.mxu0 0.0
  %218 = vmatprep.subr.mxu0 0.0
  %219 = vmatpush1.xpose.msra.mxu0 0.0
  %220 = vmatprep.subr.mxu0 0.0
  %221 = vmatpush1.xpose.msra.mxu0 0.0
  %222 = vmatprep.subr.mxu0 0.0
  %223 = vmatpush1.xpose.msra.mxu0 0.0
  %224 = vmatprep.subr.mxu0 0.0
  %225 = vmatpush1.xpose.msra.mxu0 0.0
  %226 = vmatprep.subr.mxu0 0.0
  %227 = vmatpush1.xpose.msra.mxu0 0.0
  %228 = vmatprep.subr.mxu0 0.0
  %229 = vmatpush1.xpose.msra.mxu0 0.0
  %230 = vmatprep.subr.mxu0 0.0
  %231 = vmatpush1.xpose.msra.mxu0 0.0
  %232 = vmatprep.subr.mxu0 0.0
  %233 = vmatpush1.xpose.msra.mxu0 0.0
  %234 = vmatprep.subr.mxu0 0.0
  %235 = vmatpush1.xpose.msra.mxu0 0.0
  %236 = vmatprep.subr.mxu0 0.0
  %237 = vmatpush1.xpose.msra.mxu0 0.0
  %238 = vmatprep.subr.mxu0 0.0
  %239 = vmatpush1.xpose.msra.mxu0 0.0
  %240 = vmatprep.subr.mxu0 0.0
  %241 = vmatpush1.xpose.msra.mxu0 0.0
  %242 = vmatprep.subr.mxu0 0.0
  %243 = vmatpush1.xpose.msra.mxu0 0.0
  %244 = vmatprep.subr.mxu0 0.0
  %245 = vmatpush1.xpose.msra.mxu0 0.0
  %246 = vmatprep.subr.mxu0 0.0
  %247 = vmatpush1.xpose.msra.mxu0 0.0
  %248 = vmatprep.subr.mxu0 0.0
  %249 = vmatpush1.xpose.msra.mxu0 0.0
  %250 = vmatprep.subr.mxu0 0.0
  %251 = vmatpush1.xpose.msra.mxu0 0.0
  %252 = vmatprep.subr.mxu0 0.0
  %253 = vmatpush1.xpose.msra.mxu0 0.0
  %254 = vmatprep.subr.mxu0 0.0
  %255 = vmatpush1.xpose.msra.mxu0 0.0
  %256 = vmatprep.subr.mxu0 0.0
  %257 = vmatpush1.xpose.msra.mxu0 0.0
  %258 = vmatprep.subr.mxu0 0.0
  %259 = vmatpush1.xpose.msra.mxu0 0.0
  %260 = vmatprep.subr.mxu0 0.0
  %261 = vmatpush1.xpose.msra.mxu0 0.0
  %262 = vmatprep.subr.mxu0 0.0
  %263 = vmatpush1.xpose.msra.mxu0 0.0
  %264 = vmatprep.subr.mxu0 0.0
  %265 = vmatpush1.xpose.msra.mxu0 0.0
  %266 = vmatprep.mubr.f32.mxu0 0.0
  %267 = vmatmul.mubr.f32.gmra.mrb[0].mxu0 %v198
  %v268 = vpop.f32.mrb[0].mxu0
  %v269 = vadd.f32 0.0, %v268
  %v270 = vpop.f32.mrb[0].mxu0
  %271 = vdwg.mxu0
  %273 = vrot.lane.b32.xlu0 %v191, 96
  %v274 = vpop.permute.xlu0 %273
  %v275 = vsel %vm197, %v191, 0
  %v277 = vsel %vm197, %v274, 0
  %279 = vmatprep.subr.mxu0 0.0
  %280 = vmatpush1.xpose.msra.mxu0 %v277
  %281 = vmatprep.subr.mxu0 0.0
  %282 = vmatpush1.xpose.msra.mxu0 0.0
  %283 = vmatprep.subr.mxu0 0.0
  %284 = vmatpush1.xpose.msra.mxu0 0.0
  %285 = vmatprep.subr.mxu0 0.0
  %286 = vmatpush1.xpose.msra.mxu0 0.0
  %287 = vmatprep.subr.mxu0 0.0
  %288 = vmatpush1.xpose.msra.mxu0 0.0
  %289 = vmatprep.subr.mxu0 0.0
  %290 = vmatpush1.xpose.msra.mxu0 0.0
  %291 = vmatprep.subr.mxu0 0.0
  %292 = vmatpush1.xpose.msra.mxu0 0.0
  %293 = vmatprep.subr.mxu0 0.0
  %294 = vmatpush1.xpose.msra.mxu0 0.0
  %295 = vmatprep.subr.mxu0 0.0
  %296 = vmatpush1.xpose.msra.mxu0 0.0
  %297 = vmatprep.subr.mxu0 0.0
  %298 = vmatpush1.xpose.msra.mxu0 0.0
  %299 = vmatprep.subr.mxu0 0.0
  %300 = vmatpush1.xpose.msra.mxu0 0.0
  %301 = vmatprep.subr.mxu0 0.0
  %302 = vmatpush1.xpose.msra.mxu0 0.0
  %303 = vmatprep.subr.mxu0 0.0
  %304 = vmatpush1.xpose.msra.mxu0 0.0
  %305 = vmatprep.subr.mxu0 0.0
  %306 = vmatpush1.xpose.msra.mxu0 0.0
  %307 = vmatprep.subr.mxu0 0.0
  %308 = vmatpush1.xpose.msra.mxu0 0.0
  %309 = vmatprep.subr.mxu0 0.0
  %310 = vmatpush1.xpose.msra.mxu0 0.0
  %311 = vmatprep.subr.mxu0 0.0
  %312 = vmatpush1.xpose.msra.mxu0 0.0
  %313 = vmatprep.subr.mxu0 0.0
  %314 = vmatpush1.xpose.msra.mxu0 0.0
  %315 = vmatprep.subr.mxu0 0.0
  %316 = vmatpush1.xpose.msra.mxu0 0.0
  %317 = vmatprep.subr.mxu0 0.0
  %318 = vmatpush1.xpose.msra.mxu0 0.0
  %319 = vmatprep.subr.mxu0 0.0
  %320 = vmatpush1.xpose.msra.mxu0 0.0
  %321 = vmatprep.subr.mxu0 0.0
  %322 = vmatpush1.xpose.msra.mxu0 0.0
  %323 = vmatprep.subr.mxu0 0.0
  %324 = vmatpush1.xpose.msra.mxu0 0.0
  %325 = vmatprep.subr.mxu0 0.0
  %326 = vmatpush1.xpose.msra.mxu0 0.0
  %327 = vmatprep.subr.mxu0 0.0
  %328 = vmatpush1.xpose.msra.mxu0 0.0
  %329 = vmatprep.subr.mxu0 0.0
  %330 = vmatpush1.xpose.msra.mxu0 0.0
  %331 = vmatprep.subr.mxu0 0.0
  %332 = vmatpush1.xpose.msra.mxu0 0.0
  %333 = vmatprep.subr.mxu0 0.0
  %334 = vmatpush1.xpose.msra.mxu0 0.0
  %335 = vmatprep.subr.mxu0 0.0
  %336 = vmatpush1.xpose.msra.mxu0 0.0
  %337 = vmatprep.subr.mxu0 0.0
  %338 = vmatpush1.xpose.msra.mxu0 0.0
  %339 = vmatprep.subr.mxu0 0.0
  %340 = vmatpush1.xpose.msra.mxu0 0.0
  %341 = vmatprep.subr.mxu0 0.0
  %342 = vmatpush1.xpose.msra.mxu0 0.0
  %343 = vmatprep.mubr.f32.mxu0 0.0
  %344 = vmatmul.mubr.f32.gmra.mrb[0].mxu0 %v275
  %v345 = vpop.f32.mrb[0].mxu0
  %v346 = vadd.f32 0.0, %v345
  %v347 = vpop.f32.mrb[0].mxu0
  %348 = vdwg.mxu0
  %v349 = vmul.f32 %v269, 0.25
  %v350 = vmul.f32 %v346, 0.25
  %v351 = vlaneseq
  %v352 = vshrl.u32 %v351, 7
  %v353 = vsub.s32 0, %v352
  %v354 = vrot.slane %v89, %v353
  %v355 = vlaneseq
  %v356 = vshrl.u32 %v355, 7
  %v357 = vsub.s32 0, %v356
  %v358 = vrot.slane %v96, %v357
  %v361 = vadd.f32 %v349, %v354
  %v362 = vadd.f32 %v350, %v358
  %vm363 = vcmask 64512
  %v364 = vsel %vm363, %v361, -inf
  %365 = vmax.xlane.f32.xlu0 %v364
  %v366 = vpop.xlane.xlu0 %365
  %v367 = vsel %vm363, %v362, -inf
  %368 = vmax.xlane.f32.xlu0 %v367
  %v369 = vpop.xlane.xlu0 %368
  %v370 = vsub.f32 %v361, %v366
  %v371 = vsub.f32 %v362, %v369
  %v372 = vmul.f32 %v370, 1.442695
  %v373 = vpow.pop %v372
  %v374 = vmul.f32 %v371, 1.442695
  %v375 = vpow.pop %v374
  %v376 = vsel %vm363, %v373, 0.0
  %377 = vadd.xlane.f32.xlu0 %v376
  %v378 = vpop.xlane.xlu0 %377
  %v379 = vsel %vm363, %v375, 0.0
  %380 = vadd.xlane.f32.xlu0 %v379
  %v381 = vpop.xlane.xlu0 %380
  %v382 = vrcp.pop %v378
  %v383 = vrcp.pop %v381
  %v384 = vmul.f32 %v373, %v382
  %v385 = vmul.f32 %v375, %v383
  %386 = vrot.lane.b32.xlu0 %v186, 64
  %v387 = vpop.permute.xlu0 %386
  %v390 = vsel %vm363, %v384, 0
  %392 = vmatprep.subr.mxu0 0.0
  %393 = vmatpush1.msra.mxu0 %v387
  %394 = vmatprep.subr.mxu0 0.0
  %395 = vmatpush1.msra.mxu0 0.0
  %396 = vmatprep.subr.mxu0 0.0
  %397 = vmatpush1.msra.mxu0 0.0
  %398 = vmatprep.subr.mxu0 0.0
  %399 = vmatpush1.msra.mxu0 0.0
  %400 = vmatprep.subr.mxu0 0.0
  %401 = vmatpush1.msra.mxu0 0.0
  %402 = vmatprep.subr.mxu0 0.0
  %403 = vmatpush1.msra.mxu0 0.0
  %404 = vmatprep.subr.mxu0 0.0
  %405 = vmatpush1.msra.mxu0 0.0
  %406 = vmatprep.subr.mxu0 0.0
  %407 = vmatpush1.msra.mxu0 0.0
  %408 = vmatprep.subr.mxu0 0.0
  %409 = vmatpush1.msra.mxu0 0.0
  %410 = vmatprep.subr.mxu0 0.0
  %411 = vmatpush1.msra.mxu0 0.0
  %412 = vmatprep.subr.mxu0 0.0
  %413 = vmatpush1.msra.mxu0 0.0
  %414 = vmatprep.subr.mxu0 0.0
  %415 = vmatpush1.msra.mxu0 0.0
  %416 = vmatprep.subr.mxu0 0.0
  %417 = vmatpush1.msra.mxu0 0.0
  %418 = vmatprep.subr.mxu0 0.0
  %419 = vmatpush1.msra.mxu0 0.0
  %420 = vmatprep.subr.mxu0 0.0
  %421 = vmatpush1.msra.mxu0 0.0
  %422 = vmatprep.subr.mxu0 0.0
  %423 = vmatpush1.msra.mxu0 0.0
  %424 = vmatprep.subr.mxu0 0.0
  %425 = vmatpush1.msra.mxu0 0.0
  %426 = vmatprep.subr.mxu0 0.0
  %427 = vmatpush1.msra.mxu0 0.0
  %428 = vmatprep.subr.mxu0 0.0
  %429 = vmatpush1.msra.mxu0 0.0
  %430 = vmatprep.subr.mxu0 0.0
  %431 = vmatpush1.msra.mxu0 0.0
  %432 = vmatprep.subr.mxu0 0.0
  %433 = vmatpush1.msra.mxu0 0.0
  %434 = vmatprep.subr.mxu0 0.0
  %435 = vmatpush1.msra.mxu0 0.0
  %436 = vmatprep.subr.mxu0 0.0
  %437 = vmatpush1.msra.mxu0 0.0
  %438 = vmatprep.subr.mxu0 0.0
  %439 = vmatpush1.msra.mxu0 0.0
  %440 = vmatprep.subr.mxu0 0.0
  %441 = vmatpush1.msra.mxu0 0.0
  %442 = vmatprep.subr.mxu0 0.0
  %443 = vmatpush1.msra.mxu0 0.0
  %444 = vmatprep.subr.mxu0 0.0
  %445 = vmatpush1.msra.mxu0 0.0
  %446 = vmatprep.subr.mxu0 0.0
  %447 = vmatpush1.msra.mxu0 0.0
  %448 = vmatprep.subr.mxu0 0.0
  %449 = vmatpush1.msra.mxu0 0.0
  %450 = vmatprep.subr.mxu0 0.0
  %451 = vmatpush1.msra.mxu0 0.0
  %452 = vmatprep.subr.mxu0 0.0
  %453 = vmatpush1.msra.mxu0 0.0
  %454 = vmatprep.subr.mxu0 0.0
  %455 = vmatpush1.msra.mxu0 0.0
  %456 = vmatprep.mubr.f32.mxu0 0.0
  %457 = vmatmul.mubr.f32.gmra.mrb[0].mxu0 %v390
  %v458 = vpop.f32.mrb[0].mxu0
  %v459 = vadd.f32 0.0, %v458
  %v460 = vpop.f32.mrb[0].mxu0
  %461 = vdwg.mxu0
  %462 = vrot.lane.b32.xlu0 %v191, 64
  %v463 = vpop.permute.xlu0 %462
  %v466 = vsel %vm363, %v385, 0
  %468 = vmatprep.subr.mxu0 0.0
  %469 = vmatpush1.msra.mxu0 %v463
  %470 = vmatprep.subr.mxu0 0.0
  %471 = vmatpush1.msra.mxu0 0.0
  %472 = vmatprep.subr.mxu0 0.0
  %473 = vmatpush1.msra.mxu0 0.0
  %474 = vmatprep.subr.mxu0 0.0
  %475 = vmatpush1.msra.mxu0 0.0
  %476 = vmatprep.subr.mxu0 0.0
  %477 = vmatpush1.msra.mxu0 0.0
  %478 = vmatprep.subr.mxu0 0.0
  %479 = vmatpush1.msra.mxu0 0.0
  %480 = vmatprep.subr.mxu0 0.0
  %481 = vmatpush1.msra.mxu0 0.0
  %482 = vmatprep.subr.mxu0 0.0
  %483 = vmatpush1.msra.mxu0 0.0
  %484 = vmatprep.subr.mxu0 0.0
  %485 = vmatpush1.msra.mxu0 0.0
  %486 = vmatprep.subr.mxu0 0.0
  %487 = vmatpush1.msra.mxu0 0.0
  %488 = vmatprep.subr.mxu0 0.0
  %489 = vmatpush1.msra.mxu0 0.0
  %490 = vmatprep.subr.mxu0 0.0
  %491 = vmatpush1.msra.mxu0 0.0
  %492 = vmatprep.subr.mxu0 0.0
  %493 = vmatpush1.msra.mxu0 0.0
  %494 = vmatprep.subr.mxu0 0.0
  %495 = vmatpush1.msra.mxu0 0.0
  %496 = vmatprep.subr.mxu0 0.0
  %497 = vmatpush1.msra.mxu0 0.0
  %498 = vmatprep.subr.mxu0 0.0
  %499 = vmatpush1.msra.mxu0 0.0
  %500 = vmatprep.subr.mxu0 0.0
  %501 = vmatpush1.msra.mxu0 0.0
  %502 = vmatprep.subr.mxu0 0.0
  %503 = vmatpush1.msra.mxu0 0.0
  %504 = vmatprep.subr.mxu0 0.0
  %505 = vmatpush1.msra.mxu0 0.0
  %506 = vmatprep.subr.mxu0 0.0
  %507 = vmatpush1.msra.mxu0 0.0
  %508 = vmatprep.subr.mxu0 0.0
  %509 = vmatpush1.msra.mxu0 0.0
  %510 = vmatprep.subr.mxu0 0.0
  %511 = vmatpush1.msra.mxu0 0.0
  %512 = vmatprep.subr.mxu0 0.0
  %513 = vmatpush1.msra.mxu0 0.0
  %514 = vmatprep.subr.mxu0 0.0
  %515 = vmatpush1.msra.mxu0 0.0
  %516 = vmatprep.subr.mxu0 0.0
  %517 = vmatpush1.msra.mxu0 0.0
  %518 = vmatprep.subr.mxu0 0.0
  %519 = vmatpush1.msra.mxu0 0.0
  %520 = vmatprep.subr.mxu0 0.0
  %521 = vmatpush1.msra.mxu0 0.0
  %522 = vmatprep.subr.mxu0 0.0
  %523 = vmatpush1.msra.mxu0 0.0
  %524 = vmatprep.subr.mxu0 0.0
  %525 = vmatpush1.msra.mxu0 0.0
  %526 = vmatprep.subr.mxu0 0.0
  %527 = vmatpush1.msra.mxu0 0.0
  %528 = vmatprep.subr.mxu0 0.0
  %529 = vmatpush1.msra.mxu0 0.0
  %530 = vmatprep.subr.mxu0 0.0
  %531 = vmatpush1.msra.mxu0 0.0
  %532 = vmatprep.mubr.f32.mxu0 0.0
  %533 = vmatmul.mubr.f32.gmra.mrb[0].mxu0 %v466
  %v534 = vpop.f32.mrb[0].mxu0
  %v535 = vadd.f32 0.0, %v534
  %v536 = vpop.f32.mrb[0].mxu0
  %537 = vdwg.mxu0
  %538 = vrot.lane.b32.xlu0 %v186, 112
  %v539 = vpop.permute.xlu0 %538
  %540 = vrot.lane.b32.xlu0 %v186, 80
  %v541 = vpop.permute.xlu0 %540
  %v542 = vsel %vm197, %v539, 0
  %v544 = vsel %vm197, %v541, 0
  %546 = vmatprep.subr.mxu0 0.0
  %547 = vmatpush1.xpose.msra.mxu0 %v544
  %548 = vmatprep.subr.mxu0 0.0
  %549 = vmatpush1.xpose.msra.mxu0 0.0
  %550 = vmatprep.subr.mxu0 0.0
  %551 = vmatpush1.xpose.msra.mxu0 0.0
  %552 = vmatprep.subr.mxu0 0.0
  %553 = vmatpush1.xpose.msra.mxu0 0.0
  %554 = vmatprep.subr.mxu0 0.0
  %555 = vmatpush1.xpose.msra.mxu0 0.0
  %556 = vmatprep.subr.mxu0 0.0
  %557 = vmatpush1.xpose.msra.mxu0 0.0
  %558 = vmatprep.subr.mxu0 0.0
  %559 = vmatpush1.xpose.msra.mxu0 0.0
  %560 = vmatprep.subr.mxu0 0.0
  %561 = vmatpush1.xpose.msra.mxu0 0.0
  %562 = vmatprep.subr.mxu0 0.0
  %563 = vmatpush1.xpose.msra.mxu0 0.0
  %564 = vmatprep.subr.mxu0 0.0
  %565 = vmatpush1.xpose.msra.mxu0 0.0
  %566 = vmatprep.subr.mxu0 0.0
  %567 = vmatpush1.xpose.msra.mxu0 0.0
  %568 = vmatprep.subr.mxu0 0.0
  %569 = vmatpush1.xpose.msra.mxu0 0.0
  %570 = vmatprep.subr.mxu0 0.0
  %571 = vmatpush1.xpose.msra.mxu0 0.0
  %572 = vmatprep.subr.mxu0 0.0
  %573 = vmatpush1.xpose.msra.mxu0 0.0
  %574 = vmatprep.subr.mxu0 0.0
  %575 = vmatpush1.xpose.msra.mxu0 0.0
  %576 = vmatprep.subr.mxu0 0.0
  %577 = vmatpush1.xpose.msra.mxu0 0.0
  %578 = vmatprep.subr.mxu0 0.0
  %579 = vmatpush1.xpose.msra.mxu0 0.0
  %580 = vmatprep.subr.mxu0 0.0
  %581 = vmatpush1.xpose.msra.mxu0 0.0
  %582 = vmatprep.subr.mxu0 0.0
  %583 = vmatpush1.xpose.msra.mxu0 0.0
  %584 = vmatprep.subr.mxu0 0.0
  %585 = vmatpush1.xpose.msra.mxu0 0.0
  %586 = vmatprep.subr.mxu0 0.0
  %587 = vmatpush1.xpose.msra.mxu0 0.0
  %588 = vmatprep.subr.mxu0 0.0
  %589 = vmatpush1.xpose.msra.mxu0 0.0
  %590 = vmatprep.subr.mxu0 0.0
  %591 = vmatpush1.xpose.msra.mxu0 0.0
  %592 = vmatprep.subr.mxu0 0.0
  %593 = vmatpush1.xpose.msra.mxu0 0.0
  %594 = vmatprep.subr.mxu0 0.0
  %595 = vmatpush1.xpose.msra.mxu0 0.0
  %596 = vmatprep.subr.mxu0 0.0
  %597 = vmatpush1.xpose.msra.mxu0 0.0
  %598 = vmatprep.subr.mxu0 0.0
  %599 = vmatpush1.xpose.msra.mxu0 0.0
  %600 = vmatprep.subr.mxu0 0.0
  %601 = vmatpush1.xpose.msra.mxu0 0.0
  %602 = vmatprep.subr.mxu0 0.0
  %603 = vmatpush1.xpose.msra.mxu0 0.0
  %604 = vmatprep.subr.mxu0 0.0
  %605 = vmatpush1.xpose.msra.mxu0 0.0
  %606 = vmatprep.subr.mxu0 0.0
  %607 = vmatpush1.xpose.msra.mxu0 0.0
  %608 = vmatprep.subr.mxu0 0.0
  %609 = vmatpush1.xpose.msra.mxu0 0.0
  %610 = vmatprep.mubr.f32.mxu0 0.0
  %611 = vmatmul.mubr.f32.gmra.mrb[0].mxu0 %v542
  %v612 = vpop.f32.mrb[0].mxu0
  %v613 = vadd.f32 0.0, %v612
  %v614 = vpop.f32.mrb[0].mxu0
  %615 = vdwg.mxu0
  %616 = vrot.lane.b32.xlu0 %v191, 112
  %v617 = vpop.permute.xlu0 %616
  %618 = vrot.lane.b32.xlu0 %v191, 80
  %v619 = vpop.permute.xlu0 %618
  %v620 = vsel %vm197, %v617, 0
  %v622 = vsel %vm197, %v619, 0
  %624 = vmatprep.subr.mxu0 0.0
  %625 = vmatpush1.xpose.msra.mxu0 %v622
  %626 = vmatprep.subr.mxu0 0.0
  %627 = vmatpush1.xpose.msra.mxu0 0.0
  %628 = vmatprep.subr.mxu0 0.0
  %629 = vmatpush1.xpose.msra.mxu0 0.0
  %630 = vmatprep.subr.mxu0 0.0
  %631 = vmatpush1.xpose.msra.mxu0 0.0
  %632 = vmatprep.subr.mxu0 0.0
  %633 = vmatpush1.xpose.msra.mxu0 0.0
  %634 = vmatprep.subr.mxu0 0.0
  %635 = vmatpush1.xpose.msra.mxu0 0.0
  %636 = vmatprep.subr.mxu0 0.0
  %637 = vmatpush1.xpose.msra.mxu0 0.0
  %638 = vmatprep.subr.mxu0 0.0
  %639 = vmatpush1.xpose.msra.mxu0 0.0
  %640 = vmatprep.subr.mxu0 0.0
  %641 = vmatpush1.xpose.msra.mxu0 0.0
  %642 = vmatprep.subr.mxu0 0.0
  %643 = vmatpush1.xpose.msra.mxu0 0.0
  %644 = vmatprep.subr.mxu0 0.0
  %645 = vmatpush1.xpose.msra.mxu0 0.0
  %646 = vmatprep.subr.mxu0 0.0
  %647 = vmatpush1.xpose.msra.mxu0 0.0
  %648 = vmatprep.subr.mxu0 0.0
  %649 = vmatpush1.xpose.msra.mxu0 0.0
  %650 = vmatprep.subr.mxu0 0.0
  %651 = vmatpush1.xpose.msra.mxu0 0.0
  %652 = vmatprep.subr.mxu0 0.0
  %653 = vmatpush1.xpose.msra.mxu0 0.0
  %654 = vmatprep.subr.mxu0 0.0
  %655 = vmatpush1.xpose.msra.mxu0 0.0
  %656 = vmatprep.subr.mxu0 0.0
  %657 = vmatpush1.xpose.msra.mxu0 0.0
  %658 = vmatprep.subr.mxu0 0.0
  %659 = vmatpush1.xpose.msra.mxu0 0.0
  %660 = vmatprep.subr.mxu0 0.0
  %661 = vmatpush1.xpose.msra.mxu0 0.0
  %662 = vmatprep.subr.mxu0 0.0
  %663 = vmatpush1.xpose.msra.mxu0 0.0
  %664 = vmatprep.subr.mxu0 0.0
  %665 = vmatpush1.xpose.msra.mxu0 0.0
  %666 = vmatprep.subr.mxu0 0.0
  %667 = vmatpush1.xpose.msra.mxu0 0.0
  %668 = vmatprep.subr.mxu0 0.0
  %669 = vmatpush1.xpose.msra.mxu0 0.0
  %670 = vmatprep.subr.mxu0 0.0
  %671 = vmatpush1.xpose.msra.mxu0 0.0
  %672 = vmatprep.subr.mxu0 0.0
  %673 = vmatpush1.xpose.msra.mxu0 0.0
  %674 = vmatprep.subr.mxu0 0.0
  %675 = vmatpush1.xpose.msra.mxu0 0.0
  %676 = vmatprep.subr.mxu0 0.0
  %677 = vmatpush1.xpose.msra.mxu0 0.0
  %678 = vmatprep.subr.mxu0 0.0
  %679 = vmatpush1.xpose.msra.mxu0 0.0
  %680 = vmatprep.subr.mxu0 0.0
  %681 = vmatpush1.xpose.msra.mxu0 0.0
  %682 = vmatprep.subr.mxu0 0.0
  %683 = vmatpush1.xpose.msra.mxu0 0.0
  %684 = vmatprep.subr.mxu0 0.0
  %685 = vmatpush1.xpose.msra.mxu0 0.0
  %686 = vmatprep.subr.mxu0 0.0
  %687 = vmatpush1.xpose.msra.mxu0 0.0
  %688 = vmatprep.mubr.f32.mxu0 0.0
  %689 = vmatmul.mubr.f32.gmra.mrb[0].mxu0 %v620
  %v690 = vpop.f32.mrb[0].mxu0
  %v691 = vadd.f32 0.0, %v690
  %v692 = vpop.f32.mrb[0].mxu0
  %693 = vdwg.mxu0
  %v694 = vmul.f32 %v613, 0.25
  %v695 = vmul.f32 %v691, 0.25
  %v696 = vadd.f32 %v694, %v354
  %v697 = vadd.f32 %v695, %v358
  %v698 = vsel %vm363, %v696, -inf
  %699 = vmax.xlane.f32.xlu0 %v698
  %v700 = vpop.xlane.xlu0 %699
  %v701 = vsel %vm363, %v697, -inf
  %702 = vmax.xlane.f32.xlu0 %v701
  %v703 = vpop.xlane.xlu0 %702
  %v704 = vsub.f32 %v696, %v700
  %v705 = vsub.f32 %v697, %v703
  %v706 = vmul.f32 %v704, 1.442695
  %v707 = vpow.pop %v706
  %v708 = vmul.f32 %v705, 1.442695
  %v709 = vpow.pop %v708
  %v710 = vsel %vm363, %v707, 0.0
  %711 = vadd.xlane.f32.xlu0 %v710
  %v712 = vpop.xlane.xlu0 %711
  %v713 = vsel %vm363, %v709, 0.0
  %714 = vadd.xlane.f32.xlu0 %v713
  %v715 = vpop.xlane.xlu0 %714
  %v716 = vrcp.pop %v712
  %v717 = vrcp.pop %v715
  %v718 = vmul.f32 %v707, %v716
  %v719 = vmul.f32 %v709, %v717
  %720 = vrot.lane.b32.xlu0 %v186, 48
  %v721 = vpop.permute.xlu0 %720
  %v724 = vsel %vm363, %v718, 0
  %726 = vmatprep.subr.mxu0 0.0
  %727 = vmatpush1.msra.mxu0 %v721
  %728 = vmatprep.subr.mxu0 0.0
  %729 = vmatpush1.msra.mxu0 0.0
  %730 = vmatprep.subr.mxu0 0.0
  %731 = vmatpush1.msra.mxu0 0.0
  %732 = vmatprep.subr.mxu0 0.0
  %733 = vmatpush1.msra.mxu0 0.0
  %734 = vmatprep.subr.mxu0 0.0
  %735 = vmatpush1.msra.mxu0 0.0
  %736 = vmatprep.subr.mxu0 0.0
  %737 = vmatpush1.msra.mxu0 0.0
  %738 = vmatprep.subr.mxu0 0.0
  %739 = vmatpush1.msra.mxu0 0.0
  %740 = vmatprep.subr.mxu0 0.0
  %741 = vmatpush1.msra.mxu0 0.0
  %742 = vmatprep.subr.mxu0 0.0
  %743 = vmatpush1.msra.mxu0 0.0
  %744 = vmatprep.subr.mxu0 0.0
  %745 = vmatpush1.msra.mxu0 0.0
  %746 = vmatprep.subr.mxu0 0.0
  %747 = vmatpush1.msra.mxu0 0.0
  %748 = vmatprep.subr.mxu0 0.0
  %749 = vmatpush1.msra.mxu0 0.0
  %750 = vmatprep.subr.mxu0 0.0
  %751 = vmatpush1.msra.mxu0 0.0
  %752 = vmatprep.subr.mxu0 0.0
  %753 = vmatpush1.msra.mxu0 0.0
  %754 = vmatprep.subr.mxu0 0.0
  %755 = vmatpush1.msra.mxu0 0.0
  %756 = vmatprep.subr.mxu0 0.0
  %757 = vmatpush1.msra.mxu0 0.0
  %758 = vmatprep.subr.mxu0 0.0
  %759 = vmatpush1.msra.mxu0 0.0
  %760 = vmatprep.subr.mxu0 0.0
  %761 = vmatpush1.msra.mxu0 0.0
  %762 = vmatprep.subr.mxu0 0.0
  %763 = vmatpush1.msra.mxu0 0.0
  %764 = vmatprep.subr.mxu0 0.0
  %765 = vmatpush1.msra.mxu0 0.0
  %766 = vmatprep.subr.mxu0 0.0
  %767 = vmatpush1.msra.mxu0 0.0
  %768 = vmatprep.subr.mxu0 0.0
  %769 = vmatpush1.msra.mxu0 0.0
  %770 = vmatprep.subr.mxu0 0.0
  %771 = vmatpush1.msra.mxu0 0.0
  %772 = vmatprep.subr.mxu0 0.0
  %773 = vmatpush1.msra.mxu0 0.0
  %774 = vmatprep.subr.mxu0 0.0
  %775 = vmatpush1.msra.mxu0 0.0
  %776 = vmatprep.subr.mxu0 0.0
  %777 = vmatpush1.msra.mxu0 0.0
  %778 = vmatprep.subr.mxu0 0.0
  %779 = vmatpush1.msra.mxu0 0.0
  %780 = vmatprep.subr.mxu0 0.0
  %781 = vmatpush1.msra.mxu0 0.0
  %782 = vmatprep.subr.mxu0 0.0
  %783 = vmatpush1.msra.mxu0 0.0
  %784 = vmatprep.subr.mxu0 0.0
  %785 = vmatpush1.msra.mxu0 0.0
  %786 = vmatprep.subr.mxu0 0.0
  %787 = vmatpush1.msra.mxu0 0.0
  %788 = vmatprep.subr.mxu0 0.0
  %789 = vmatpush1.msra.mxu0 0.0
  %790 = vmatprep.mubr.f32.mxu0 0.0
  %791 = vmatmul.mubr.f32.gmra.mrb[0].mxu0 %v724
  %v792 = vpop.f32.mrb[0].mxu0
  %v793 = vadd.f32 0.0, %v792
  %v794 = vpop.f32.mrb[0].mxu0
  %795 = vdwg.mxu0
  %796 = vrot.lane.b32.xlu0 %v191, 48
  %v797 = vpop.permute.xlu0 %796
  %v800 = vsel %vm363, %v719, 0
  %802 = vmatprep.subr.mxu0 0.0
  %803 = vmatpush1.msra.mxu0 %v797
  %804 = vmatprep.subr.mxu0 0.0
  %805 = vmatpush1.msra.mxu0 0.0
  %806 = vmatprep.subr.mxu0 0.0
  %807 = vmatpush1.msra.mxu0 0.0
  %808 = vmatprep.subr.mxu0 0.0
  %809 = vmatpush1.msra.mxu0 0.0
  %810 = vmatprep.subr.mxu0 0.0
  %811 = vmatpush1.msra.mxu0 0.0
  %812 = vmatprep.subr.mxu0 0.0
  %813 = vmatpush1.msra.mxu0 0.0
  %814 = vmatprep.subr.mxu0 0.0
  %815 = vmatpush1.msra.mxu0 0.0
  %816 = vmatprep.subr.mxu0 0.0
  %817 = vmatpush1.msra.mxu0 0.0
  %818 = vmatprep.subr.mxu0 0.0
  %819 = vmatpush1.msra.mxu0 0.0
  %820 = vmatprep.subr.mxu0 0.0
  %821 = vmatpush1.msra.mxu0 0.0
  %822 = vmatprep.subr.mxu0 0.0
  %823 = vmatpush1.msra.mxu0 0.0
  %824 = vmatprep.subr.mxu0 0.0
  %825 = vmatpush1.msra.mxu0 0.0
  %826 = vmatprep.subr.mxu0 0.0
  %827 = vmatpush1.msra.mxu0 0.0
  %828 = vmatprep.subr.mxu0 0.0
  %829 = vmatpush1.msra.mxu0 0.0
  %830 = vmatprep.subr.mxu0 0.0
  %831 = vmatpush1.msra.mxu0 0.0
  %832 = vmatprep.subr.mxu0 0.0
  %833 = vmatpush1.msra.mxu0 0.0
  %834 = vmatprep.subr.mxu0 0.0
  %835 = vmatpush1.msra.mxu0 0.0
  %836 = vmatprep.subr.mxu0 0.0
  %837 = vmatpush1.msra.mxu0 0.0
  %838 = vmatprep.subr.mxu0 0.0
  %839 = vmatpush1.msra.mxu0 0.0
  %840 = vmatprep.subr.mxu0 0.0
  %841 = vmatpush1.msra.mxu0 0.0
  %842 = vmatprep.subr.mxu0 0.0
  %843 = vmatpush1.msra.mxu0 0.0
  %844 = vmatprep.subr.mxu0 0.0
  %845 = vmatpush1.msra.mxu0 0.0
  %846 = vmatprep.subr.mxu0 0.0
  %847 = vmatpush1.msra.mxu0 0.0
  %848 = vmatprep.subr.mxu0 0.0
  %849 = vmatpush1.msra.mxu0 0.0
  %850 = vmatprep.subr.mxu0 0.0
  %851 = vmatpush1.msra.mxu0 0.0
  %852 = vmatprep.subr.mxu0 0.0
  %853 = vmatpush1.msra.mxu0 0.0
  %854 = vmatprep.subr.mxu0 0.0
  %855 = vmatpush1.msra.mxu0 0.0
  %856 = vmatprep.subr.mxu0 0.0
  %857 = vmatpush1.msra.mxu0 0.0
  %858 = vmatprep.subr.mxu0 0.0
  %859 = vmatpush1.msra.mxu0 0.0
  %860 = vmatprep.subr.mxu0 0.0
  %861 = vmatpush1.msra.mxu0 0.0
  %862 = vmatprep.subr.mxu0 0.0
  %863 = vmatpush1.msra.mxu0 0.0
  %864 = vmatprep.subr.mxu0 0.0
  %865 = vmatpush1.msra.mxu0 0.0
  %866 = vmatprep.mubr.f32.mxu0 0.0
  %867 = vmatmul.mubr.f32.gmra.mrb[0].mxu0 %v800
  %v868 = vpop.f32.mrb[0].mxu0
  %v869 = vadd.f32 0.0, %v868
  %v870 = vpop.f32.mrb[0].mxu0
  %871 = vdwg.mxu0
  %874 = vrot.lane.b32.xlu0 %v793, 16
  %v875 = vpop.permute.xlu0 %874
  %876 = vrot.lane.b32.xlu0 %v869, 16
  %v877 = vpop.permute.xlu0 %876
  %v880 = vsel %vm197, %v459, %v875
  %v881 = vsel %vm197, %v535, %v877
  %v882 = vld [vmem:[%s3] sm:$0xff]
  %v883 = vld [vmem:[%s3 + $0x8] sm:$0xff]
  %v884 = vld [vmem:[%s3 + $0x10] sm:$0xff]
  %v885 = vld [vmem:[%s3 + $0x18] sm:$0xff]
  %v886 = vlaneseq
  %v887 = vshrl.u32 %v886, 7
  %v888 = vsub.s32 0, %v887
  %v889 = vrot.slane %v98, %v888
  %v891 = vsel %vm33, %v880, 0
  %v894 = vsel %vm33, %v881, 0
  %896 = vmatprep.subr.mxu0 0.0
  %897 = vmatpush1.msra.mxu0 %v882
  %898 = vmatprep.subr.mxu0 0.0
  %899 = vmatpush1.msra.mxu0 %v883
  %900 = vmatprep.subr.mxu0 0.0
  %901 = vmatpush1.msra.mxu0 %v884
  %902 = vmatprep.subr.mxu0 0.0
  %903 = vmatpush1.msra.mxu0 %v885
  %904 = vmatprep.subr.mxu0 0.0
  %905 = vmatpush1.msra.mxu0 0.0
  %906 = vmatprep.subr.mxu0 0.0
  %907 = vmatpush1.msra.mxu0 0.0
  %908 = vmatprep.subr.mxu0 0.0
  %909 = vmatpush1.msra.mxu0 0.0
  %910 = vmatprep.subr.mxu0 0.0
  %911 = vmatpush1.msra.mxu0 0.0
  %912 = vmatprep.subr.mxu0 0.0
  %913 = vmatpush1.msra.mxu0 0.0
  %914 = vmatprep.subr.mxu0 0.0
  %915 = vmatpush1.msra.mxu0 0.0
  %916 = vmatprep.subr.mxu0 0.0
  %917 = vmatpush1.msra.mxu0 0.0
  %918 = vmatprep.subr.mxu0 0.0
  %919 = vmatpush1.msra.mxu0 0.0
  %920 = vmatprep.subr.mxu0 0.0
  %921 = vmatpush1.msra.mxu0 0.0
  %922 = vmatprep.subr.mxu0 0.0
  %923 = vmatpush1.msra.mxu0 0.0
  %924 = vmatprep.subr.mxu0 0.0
  %925 = vmatpush1.msra.mxu0 0.0
  %926 = vmatprep.subr.mxu0 0.0
  %927 = vmatpush1.msra.mxu0 0.0
  %928 = vmatprep.subr.mxu0 0.0
  %929 = vmatpush1.msra.mxu0 0.0
  %930 = vmatprep.subr.mxu0 0.0
  %931 = vmatpush1.msra.mxu0 0.0
  %932 = vmatprep.subr.mxu0 0.0
  %933 = vmatpush1.msra.mxu0 0.0
  %934 = vmatprep.subr.mxu0 0.0
  %935 = vmatpush1.msra.mxu0 0.0
  %936 = vmatprep.subr.mxu0 0.0
  %937 = vmatpush1.msra.mxu0 0.0
  %938 = vmatprep.subr.mxu0 0.0
  %939 = vmatpush1.msra.mxu0 0.0
  %940 = vmatprep.subr.mxu0 0.0
  %941 = vmatpush1.msra.mxu0 0.0
  %942 = vmatprep.subr.mxu0 0.0
  %943 = vmatpush1.msra.mxu0 0.0
  %944 = vmatprep.subr.mxu0 0.0
  %945 = vmatpush1.msra.mxu0 0.0
  %946 = vmatprep.subr.mxu0 0.0
  %947 = vmatpush1.msra.mxu0 0.0
  %948 = vmatprep.subr.mxu0 0.0
  %949 = vmatpush1.msra.mxu0 0.0
  %950 = vmatprep.subr.mxu0 0.0
  %951 = vmatpush1.msra.mxu0 0.0
  %952 = vmatprep.subr.mxu0 0.0
  %953 = vmatpush1.msra.mxu0 0.0
  %954 = vmatprep.subr.mxu0 0.0
  %955 = vmatpush1.msra.mxu0 0.0
  %956 = vmatprep.subr.mxu0 0.0
  %957 = vmatpush1.msra.mxu0 0.0
  %958 = vmatprep.subr.mxu0 0.0
  %959 = vmatpush1.msra.mxu0 0.0
  %960 = vmatprep.mubr.f32.mxu0 0.0
  %961 = vmatmul.mubr.f32.gmra.mrb[0].mxu0 %v891
  %v962 = vpop.f32.mrb[0].mxu0
  %v963 = vadd.f32 %v889, %v962
  %v964 = vpop.f32.mrb[0].mxu0
  %965 = vmatprep.mubr.f32.mxu0 0.0
  %966 = vmatmul.mubr.f32.gmra.mrb[0].mxu0 %v894
  %v967 = vpop.f32.mrb[0].mxu0
  %v968 = vadd.f32 %v889, %v967
  %v969 = vpop.f32.mrb[0].mxu0
  %970 = vdwg.mxu0
  %v971 = vadd.f32 %v71, %v963
  %v972 = vadd.f32 %v72, %v968
  %v973 = vsel %vm33, %v971, 0.0
  %974 = vadd.xlane.f32.xlu0 %v973
  %v975 = vpop.xlane.xlu0 %974
  %v976 = vsel %vm33, %v972, 0.0
  %977 = vadd.xlane.f32.xlu0 %v976
  %v978 = vpop.xlane.xlu0 %977
  %v979 = vmul.f32 %v975, %v40
  %v980 = vmul.f32 %v978, %v40
  %v981 = vsub.f32 %v971, %v979
  %v982 = vsub.f32 %v972, %v980
  %v983 = vmul.f32 %v981, %v981
  %v984 = vmul.f32 %v982, %v982
  %v985 = vsel %vm33, %v983, 0.0
  %986 = vadd.xlane.f32.xlu0 %v985
  %v987 = vpop.xlane.xlu0 %986
  %v988 = vsel %vm33, %v984, 0.0
  %989 = vadd.xlane.f32.xlu0 %v988
  %v990 = vpop.xlane.xlu0 %989
  %v991 = vmul.f32 %v987, %v40
  %v992 = vmul.f32 %v990, %v40
  %v993 = vadd.f32 %v991, 1e-12
  %v994 = vadd.f32 %v992, 1e-12
  %v995 = vrsqrt.pop %v993
  %v996 = vrsqrt.pop %v994
  %v997 = vmul.f32 %v981, %v995
  %v998 = vmul.f32 %v982, %v996
  %v999 = vlaneseq
  %v1000 = vshrl.u32 %v999, 7
  %v1001 = vsub.s32 0, %v1000
  %v1002 = vrot.slane %v99, %v1001
  %v1003 = vmul.f32 %v997, %v1002
  %v1004 = vmul.f32 %v998, %v1002
  %v1005 = vlaneseq
  %v1006 = vshrl.u32 %v1005, 7
  %v1007 = vsub.s32 0, %v1006
  %v1008 = vrot.slane %v100, %v1007
  %v1009 = vadd.f32 %v1003, %v1008
  %v1010 = vadd.f32 %v1004, %v1008
  %v1011 = vld [vmem:[%s4] sm:$0xff]
  %v1012 = vld [vmem:[%s4 + $0x8] sm:$0xff]
  %v1013 = vld [vmem:[%s4 + $0x10] sm:$0xff]
  %v1014 = vld [vmem:[%s4 + $0x18] sm:$0xff]
  %v1015 = vlaneseq
  %v1016 = vshrl.u32 %v1015, 7
  %v1017 = vsub.s32 0, %v1016
  %v1018 = vrot.slane %v101, %v1017
  %v1020 = vsel %vm33, %v1009, 0
  %v1023 = vsel %vm33, %v1010, 0
  %1025 = vmatprep.subr.mxu0 0.0
  %1026 = vmatpush1.msra.mxu0 %v1011
  %1027 = vmatprep.subr.mxu0 0.0
  %1028 = vmatpush1.msra.mxu0 %v1012
  %1029 = vmatprep.subr.mxu0 0.0
  %1030 = vmatpush1.msra.mxu0 %v1013
  %1031 = vmatprep.subr.mxu0 0.0
  %1032 = vmatpush1.msra.mxu0 %v1014
  %1033 = vmatprep.subr.mxu0 0.0
  %1034 = vmatpush1.msra.mxu0 0.0
  %1035 = vmatprep.subr.mxu0 0.0
  %1036 = vmatpush1.msra.mxu0 0.0
  %1037 = vmatprep.subr.mxu0 0.0
  %1038 = vmatpush1.msra.mxu0 0.0
  %1039 = vmatprep.subr.mxu0 0.0
  %1040 = vmatpush1.msra.mxu0 0.0
  %1041 = vmatprep.subr.mxu0 0.0
  %1042 = vmatpush1.msra.mxu0 0.0
  %1043 = vmatprep.subr.mxu0 0.0
  %1044 = vmatpush1.msra.mxu0 0.0
  %1045 = vmatprep.subr.mxu0 0.0
  %1046 = vmatpush1.msra.mxu0 0.0
  %1047 = vmatprep.subr.mxu0 0.0
  %1048 = vmatpush1.msra.mxu0 0.0
  %1049 = vmatprep.subr.mxu0 0.0
  %1050 = vmatpush1.msra.mxu0 0.0
  %1051 = vmatprep.subr.mxu0 0.0
  %1052 = vmatpush1.msra.mxu0 0.0
  %1053 = vmatprep.subr.mxu0 0.0
  %1054 = vmatpush1.msra.mxu0 0.0
  %1055 = vmatprep.subr.mxu0 0.0
  %1056 = vmatpush1.msra.mxu0 0.0
  %1057 = vmatprep.subr.mxu0 0.0
  %1058 = vmatpush1.msra.mxu0 0.0
  %1059 = vmatprep.subr.mxu0 0.0
  %1060 = vmatpush1.msra.mxu0 0.0
  %1061 = vmatprep.subr.mxu0 0.0
  %1062 = vmatpush1.msra.mxu0 0.0
  %1063 = vmatprep.subr.mxu0 0.0
  %1064 = vmatpush1.msra.mxu0 0.0
  %1065 = vmatprep.subr.mxu0 0.0
  %1066 = vmatpush1.msra.mxu0 0.0
  %1067 = vmatprep.subr.mxu0 0.0
  %1068 = vmatpush1.msra.mxu0 0.0
  %1069 = vmatprep.subr.mxu0 0.0
  %1070 = vmatpush1.msra.mxu0 0.0
  %1071 = vmatprep.subr.mxu0 0.0
  %1072 = vmatpush1.msra.mxu0 0.0
  %1073 = vmatprep.subr.mxu0 0.0
  %1074 = vmatpush1.msra.mxu0 0.0
  %1075 = vmatprep.subr.mxu0 0.0
  %1076 = vmatpush1.msra.mxu0 0.0
  %1077 = vmatprep.subr.mxu0 0.0
  %1078 = vmatpush1.msra.mxu0 0.0
  %1079 = vmatprep.subr.mxu0 0.0
  %1080 = vmatpush1.msra.mxu0 0.0
  %1081 = vmatprep.subr.mxu0 0.0
  %1082 = vmatpush1.msra.mxu0 0.0
  %1083 = vmatprep.subr.mxu0 0.0
  %1084 = vmatpush1.msra.mxu0 0.0
  %1085 = vmatprep.subr.mxu0 0.0
  %1086 = vmatpush1.msra.mxu0 0.0
  %1087 = vmatprep.subr.mxu0 0.0
  %1088 = vmatpush1.msra.mxu0 0.0
  %1089 = vmatprep.mubr.f32.mxu0 0.0
  %1090 = vmatmul.mubr.f32.gmra.mrb[0].mxu0 %v1020
  %v1091 = vpop.f32.mrb[0].mxu0
  %v1092 = vadd.f32 %v1018, %v1091
  %v1093 = vpop.f32.mrb[0].mxu0
  %1094 = vmatprep.mubr.f32.mxu0 0.0
  %1095 = vmatmul.mubr.f32.gmra.mrb[0].mxu0 %v1023
  %v1096 = vpop.f32.mrb[0].mxu0
  %v1097 = vadd.f32 %v1018, %v1096
  %v1098 = vpop.f32.mrb[0].mxu0
  %1099 = vdwg.mxu0
  %v1100 = vmul.f32 %v1092, %v1092
  %v1101 = vmul.f32 %v1097, %v1097
  %v1102 = vmul.f32 %v1092, %v1100
  %v1103 = vmul.f32 %v1097, %v1101
  %v1104 = vmul.f32 %v1102, 0.044715
  %v1105 = vmul.f32 %v1103, 0.044715
  %v1106 = vadd.f32 %v1092, %v1104
  %v1107 = vadd.f32 %v1097, %v1105
  %v1108 = vmul.f32 %v1106, 0.7978846
  %v1109 = vmul.f32 %v1107, 0.7978846
  %v1110 = vtanh.pop %v1108
  %v1111 = vtanh.pop %v1109
  %v1112 = vadd.f32 %v1110, 1.0
  %v1113 = vadd.f32 %v1111, 1.0
  %v1114 = vmul.f32 %v1112, 0.5
  %v1115 = vmul.f32 %v1113, 0.5
  %v1116 = vmul.f32 %v1092, %v1114
  %v1117 = vmul.f32 %v1097, %v1115
  %v1118 = vld [vmem:[%s5] sm:$0xff]
  %v1119 = vld [vmem:[%s5 + $0x8] sm:$0xff]
  %v1120 = vld [vmem:[%s5 + $0x10] sm:$0xff]
  %v1121 = vld [vmem:[%s5 + $0x18] sm:$0xff]
  %v1122 = vld [vmem:[%s5 + $0x20] sm:$0xff]
  %v1123 = vld [vmem:[%s5 + $0x28] sm:$0xff]
  %v1124 = vld [vmem:[%s5 + $0x30] sm:$0xff]
  %v1125 = vld [vmem:[%s5 + $0x38] sm:$0xff]
  %v1126 = vlaneseq
  %v1127 = vshrl.u32 %v1126, 7
  %v1128 = vsub.s32 0, %v1127
  %v1129 = vrot.slane %v102, %v1128
  %vm1130 = vcmask 523264
  %v1132 = vsel %vm1130, %v1116, 0
  %v1135 = vsel %vm1130, %v1117, 0
  %1137 = vmatprep.subr.mxu0 0.0
  %1138 = vmatpush1.msra.mxu0 %v1118
  %1139 = vmatprep.subr.mxu0 0.0
  %1140 = vmatpush1.msra.mxu0 %v1119
  %1141 = vmatprep.subr.mxu0 0.0
  %1142 = vmatpush1.msra.mxu0 %v1120
  %1143 = vmatprep.subr.mxu0 0.0
  %1144 = vmatpush1.msra.mxu0 %v1121
  %1145 = vmatprep.subr.mxu0 0.0
  %1146 = vmatpush1.msra.mxu0 %v1122
  %1147 = vmatprep.subr.mxu0 0.0
  %1148 = vmatpush1.msra.mxu0 %v1123
  %1149 = vmatprep.subr.mxu0 0.0
  %1150 = vmatpush1.msra.mxu0 %v1124
  %1151 = vmatprep.subr.mxu0 0.0
  %1152 = vmatpush1.msra.mxu0 %v1125
  %1153 = vmatprep.subr.mxu0 0.0
  %1154 = vmatpush1.msra.mxu0 0.0
  %1155 = vmatprep.subr.mxu0 0.0
  %1156 = vmatpush1.msra.mxu0 0.0
  %1157 = vmatprep.subr.mxu0 0.0
  %1158 = vmatpush1.msra.mxu0 0.0
  %1159 = vmatprep.subr.mxu0 0.0
  %1160 = vmatpush1.msra.mxu0 0.0
  %1161 = vmatprep.subr.mxu0 0.0
  %1162 = vmatpush1.msra.mxu0 0.0
  %1163 = vmatprep.subr.mxu0 0.0
  %1164 = vmatpush1.msra.mxu0 0.0
  %1165 = vmatprep.subr.mxu0 0.0
  %1166 = vmatpush1.msra.mxu0 0.0
  %1167 = vmatprep.subr.mxu0 0.0
  %1168 = vmatpush1.msra.mxu0 0.0
  %1169 = vmatprep.subr.mxu0 0.0
  %1170 = vmatpush1.msra.mxu0 0.0
  %1171 = vmatprep.subr.mxu0 0.0
  %1172 = vmatpush1.msra.mxu0 0.0
  %1173 = vmatprep.subr.mxu0 0.0
  %1174 = vmatpush1.msra.mxu0 0.0
  %1175 = vmatprep.subr.mxu0 0.0
  %1176 = vmatpush1.msra.mxu0 0.0
  %1177 = vmatprep.subr.mxu0 0.0
  %1178 = vmatpush1.msra.mxu0 0.0
  %1179 = vmatprep.subr.mxu0 0.0
  %1180 = vmatpush1.msra.mxu0 0.0
  %1181 = vmatprep.subr.mxu0 0.0
  %1182 = vmatpush1.msra.mxu0 0.0
  %1183 = vmatprep.subr.mxu0 0.0
  %1184 = vmatpush1.msra.mxu0 0.0
  %1185 = vmatprep.subr.mxu0 0.0
  %1186 = vmatpush1.msra.mxu0 0.0
  %1187 = vmatprep.subr.mxu0 0.0
  %1188 = vmatpush1.msra.mxu0 0.0
  %1189 = vmatprep.subr.mxu0 0.0
  %1190 = vmatpush1.msra.mxu0 0.0
  %1191 = vmatprep.subr.mxu0 0.0
  %1192 = vmatpush1.msra.mxu0 0.0
  %1193 = vmatprep.subr.mxu0 0.0
  %1194 = vmatpush1.msra.mxu0 0.0
  %1195 = vmatprep.subr.mxu0 0.0
  %1196 = vmatpush1.msra.mxu0 0.0
  %1197 = vmatprep.subr.mxu0 0.0
  %1198 = vmatpush1.msra.mxu0 0.0
  %1199 = vmatprep.subr.mxu0 0.0
  %1200 = vmatpush1.msra.mxu0 0.0
  %1201 = vmatprep.mubr.f32.mxu0 0.0
  %1202 = vmatmul.mubr.f32.gmra.mrb[0].mxu0 %v1132
  %v1203 = vpop.f32.mrb[0].mxu0
  %v1204 = vadd.f32 %v1129, %v1203
  %v1205 = vpop.f32.mrb[0].mxu0
  %1206 = vmatprep.mubr.f32.mxu0 0.0
  %1207 = vmatmul.mubr.f32.gmra.mrb[0].mxu0 %v1135
  %v1208 = vpop.f32.mrb[0].mxu0
  %v1209 = vadd.f32 %v1129, %v1208
  %v1210 = vpop.f32.mrb[0].mxu0
  %1211 = vdwg.mxu0
  %v1212 = vadd.f32 %v1009, %v1204
  %v1213 = vadd.f32 %v1010, %v1209
  %v1214 = vsel %vm33, %v1212, 0.0
  %1215 = vadd.xlane.f32.xlu0 %v1214
  %v1216 = vpop.xlane.xlu0 %1215
  %v1217 = vsel %vm33, %v1213, 0.0
  %1218 = vadd.xlane.f32.xlu0 %v1217
  %v1219 = vpop.xlane.xlu0 %1218
  %v1220 = vmul.f32 %v1216, %v40
  %v1221 = vmul.f32 %v1219, %v40
  %v1222 = vsub.f32 %v1212, %v1220
  %v1223 = vsub.f32 %v1213, %v1221
  %v1224 = vmul.f32 %v1222, %v1222
  %v1225 = vmul.f32 %v1223, %v1223
  %v1226 = vsel %vm33, %v1224, 0.0
  %1227 = vadd.xlane.f32.xlu0 %v1226
  %v1228 = vpop.xlane.xlu0 %1227
  %v1229 = vsel %vm33, %v1225, 0.0
  %1230 = vadd.xlane.f32.xlu0 %v1229
  %v1231 = vpop.xlane.xlu0 %1230
  %v1232 = vmul.f32 %v1228, %v40
  %v1233 = vmul.f32 %v1231, %v40
  %v1234 = vadd.f32 %v1232, 1e-12
  %v1235 = vadd.f32 %v1233, 1e-12
  %v1236 = vrsqrt.pop %v1234
  %v1237 = vrsqrt.pop %v1235
  %v1238 = vmul.f32 %v1222, %v1236
  %v1239 = vmul.f32 %v1223, %v1237
  %v1240 = vlaneseq
  %v1241 = vshrl.u32 %v1240, 7
  %v1242 = vsub.s32 0, %v1241
  %v1243 = vrot.slane %v103, %v1242
  %v1244 = vmul.f32 %v1238, %v1243
  %v1245 = vmul.f32 %v1239, %v1243
  %v1246 = vlaneseq
  %v1247 = vshrl.u32 %v1246, 7
  %v1248 = vsub.s32 0, %v1247
  %v1249 = vrot.slane %v104, %v1248
  %v1250 = vadd.f32 %v1244, %v1249
  %v1251 = vadd.f32 %v1245, %v1249
  %v1252 = vld [vmem:[%s7 + $0xa] sm:$0x1]
  %v1253 = vld [vmem:[%s7 + $0xb] sm:$0x1]
  %v1254 = vld [vmem:[%s7 + $0xc] sm:$0x1]
  %v1255 = vld [vmem:[%s7 + $0xd] sm:$0x1]
  %v1256 = vld [vmem:[%s7 + $0xe] sm:$0x1]
  %v1257 = vld [vmem:[%s7 + $0xf] sm:$0x1]
  %v1258 = vld [vmem:[%s7 + $0x10] sm:$0x1]
  %v1259 = vld [vmem:[%s7 + $0x11] sm:$0x1]
  %s1260 = scalar_lea.vmem %s2, 32
  %v1261 = vld [vmem:[%s1260] sm:$0xff]
  %v1262 = vld [vmem:[%s1260 + $0x8] sm:$0xff]
  %v1263 = vld [vmem:[%s1260 + $0x10] sm:$0xff]
  %v1264 = vld [vmem:[%s1260 + $0x18] sm:$0xff]
  %v1265 = vlaneseq
  %v1266 = vshrl.u32 %v1265, 7
  %v1267 = vsub.s32 0, %v1266
  %v1268 = vrot.slane %v1252, %v1267
  %v1270 = vsel %vm33, %v1250, 0
  %v1273 = vsel %vm33, %v1251, 0
  %1275 = vmatprep.subr.mxu0 0.0
  %1276 = vmatpush1.msra.mxu0 %v1261
  %1277 = vmatprep.subr.mxu0 0.0
  %1278 = vmatpush1.msra.mxu0 %v1262
  %1279 = vmatprep.subr.mxu0 0.0
  %1280 = vmatpush1.msra.mxu0 %v1263
  %1281 = vmatprep.subr.mxu0 0.0
  %1282 = vmatpush1.msra.mxu0 %v1264
  %1283 = vmatprep.subr.mxu0 0.0
  %1284 = vmatpush1.msra.mxu0 0.0
  %1285 = vmatprep.subr.mxu0 0.0
  %1286 = vmatpush1.msra.mxu0 0.0
  %1287 = vmatprep.subr.mxu0 0.0
  %1288 = vmatpush1.msra.mxu0 0.0
  %1289 = vmatprep.subr.mxu0 0.0
  %1290 = vmatpush1.msra.mxu0 0.0
  %1291 = vmatprep.subr.mxu0 0.0
  %1292 = vmatpush1.msra.mxu0 0.0
  %1293 = vmatprep.subr.mxu0 0.0
  %1294 = vmatpush1.msra.mxu0 0.0
  %1295 = vmatprep.subr.mxu0 0.0
  %1296 = vmatpush1.msra.mxu0 0.0
  %1297 = vmatprep.subr.mxu0 0.0
  %1298 = vmatpush1.msra.mxu0 0.0
  %1299 = vmatprep.subr.mxu0 0.0
  %1300 = vmatpush1.msra.mxu0 0.0
  %1301 = vmatprep.subr.mxu0 0.0
  %1302 = vmatpush1.msra.mxu0 0.0
  %1303 = vmatprep.subr.mxu0 0.0
  %1304 = vmatpush1.msra.mxu0 0.0
  %1305 = vmatprep.subr.mxu0 0.0
  %1306 = vmatpush1.msra.mxu0 0.0
  %1307 = vmatprep.subr.mxu0 0.0
  %1308 = vmatpush1.msra.mxu0 0.0
  %1309 = vmatprep.subr.mxu0 0.0
  %1310 = vmatpush1.msra.mxu0 0.0
  %1311 = vmatprep.subr.mxu0 0.0
  %1312 = vmatpush1.msra.mxu0 0.0
  %1313 = vmatprep.subr.mxu0 0.0
  %1314 = vmatpush1.msra.mxu0 0.0
  %1315 = vmatprep.subr.mxu0 0.0
  %1316 = vmatpush1.msra.mxu0 0.0
  %1317 = vmatprep.subr.mxu0 0.0
  %1318 = vmatpush1.msra.mxu0 0.0
  %1319 = vmatprep.subr.mxu0 0.0
  %1320 = vmatpush1.msra.mxu0 0.0
  %1321 = vmatprep.subr.mxu0 0.0
  %1322 = vmatpush1.msra.mxu0 0.0
  %1323 = vmatprep.subr.mxu0 0.0
  %1324 = vmatpush1.msra.mxu0 0.0
  %1325 = vmatprep.subr.mxu0 0.0
  %1326 = vmatpush1.msra.mxu0 0.0
  %1327 = vmatprep.subr.mxu0 0.0
  %1328 = vmatpush1.msra.mxu0 0.0
  %1329 = vmatprep.subr.mxu0 0.0
  %1330 = vmatpush1.msra.mxu0 0.0
  %1331 = vmatprep.subr.mxu0 0.0
  %1332 = vmatpush1.msra.mxu0 0.0
  %1333 = vmatprep.subr.mxu0 0.0
  %1334 = vmatpush1.msra.mxu0 0.0
  %1335 = vmatprep.subr.mxu0 0.0
  %1336 = vmatpush1.msra.mxu0 0.0
  %1337 = vmatprep.subr.mxu0 0.0
  %1338 = vmatpush1.msra.mxu0 0.0
  %1339 = vmatprep.mubr.f32.mxu0 0.0
  %1340 = vmatmul.mubr.f32.gmra.mrb[0].mxu0 %v1270
  %v1341 = vpop.f32.mrb[0].mxu0
  %v1342 = vadd.f32 %v1268, %v1341
  %v1343 = vpop.f32.mrb[0].mxu0
  %1344 = vmatprep.mubr.f32.mxu0 0.0
  %1345 = vmatmul.mubr.f32.gmra.mrb[0].mxu0 %v1273
  %v1346 = vpop.f32.mrb[0].mxu0
  %v1347 = vadd.f32 %v1268, %v1346
  %v1348 = vpop.f32.mrb[0].mxu0
  %1349 = vdwg.mxu0
  %1351 = vrot.lane.b32.xlu0 %v1342, 96
  %v1352 = vpop.permute.xlu0 %1351
  %v1353 = vsel %vm197, %v1342, 0
  %v1355 = vsel %vm197, %v1352, 0
  %1357 = vmatprep.subr.mxu0 0.0
  %1358 = vmatpush1.xpose.msra.mxu0 %v1355
  %1359 = vmatprep.subr.mxu0 0.0
  %1360 = vmatpush1.xpose.msra.mxu0 0.0
  %1361 = vmatprep.subr.mxu0 0.0
  %1362 = vmatpush1.xpose.msra.mxu0 0.0
  %1363 = vmatprep.subr.mxu0 0.0
  %1364 = vmatpush1.xpose.msra.mxu0 0.0
  %1365 = vmatprep.subr.mxu0 0.0
  %1366 = vmatpush1.xpose.msra.mxu0 0.0
  %1367 = vmatprep.subr.mxu0 0.0
  %1368 = vmatpush1.xpose.msra.mxu0 0.0
  %1369 = vmatprep.subr.mxu0 0.0
  %1370 = vmatpush1.xpose.msra.mxu0 0.0
  %1371 = vmatprep.subr.mxu0 0.0
  %1372 = vmatpush1.xpose.msra.mxu0 0.0
  %1373 = vmatprep.subr.mxu0 0.0
  %1374 = vmatpush1.xpose.msra.mxu0 0.0
  %1375 = vmatprep.subr.mxu0 0.0
  %1376 = vmatpush1.xpose.msra.mxu0 0.0
  %1377 = vmatprep.subr.mxu0 0.0
  %1378 = vmatpush1.xpose.msra.mxu0 0.0
  %1379 = vmatprep.subr.mxu0 0.0
  %1380 = vmatpush1.xpose.msra.mxu0 0.0
  %1381 = vmatprep.subr.mxu0 0.0
  %1382 = vmatpush1.xpose.msra.mxu0 0.0
  %1383 = vmatprep.subr.mxu0 0.0
  %1384 = vmatpush1.xpose.msra.mxu0 0.0
  %1385 = vmatprep.subr.mxu0 0.0
  %1386 = vmatpush1.xpose.msra.mxu0 0.0
  %1387 = vmatprep.subr.mxu0 0.0
  %1388 = vmatpush1.xpose.msra.mxu0 0.0
  %1389 = vmatprep.subr.mxu0 0.0
  %1390 = vmatpush1.xpose.msra.mxu0 0.0
  %1391 = vmatprep.subr.mxu0 0.0
  %1392 = vmatpush1.xpose.msra.mxu0 0.0
  %1393 = vmatprep.subr.mxu0 0.0
  %1394 = vmatpush1.xpose.msra.mxu0 0.0
  %1395 = vmatprep.subr.mxu0 0.0
  %1396 = vmatpush1.xpose.msra.mxu0 0.0
  %1397 = vmatprep.subr.mxu0 0.0
  %1398 = vmatpush1.xpose.msra.mxu0 0.0
  %1399 = vmatprep.subr.mxu0 0.0
  %1400 = vmatpush1.xpose.msra.mxu0 0.0
  %1401 = vmatprep.subr.mxu0 0.0
  %1402 = vmatpush1.xpose.msra.mxu0 0.0
  %1403 = vmatprep.subr.mxu0 0.0
  %1404 = vmatpush1.xpose.msra.mxu0 0.0
  %1405 = vmatprep.subr.mxu0 0.0
  %1406 = vmatpush1.xpose.msra.mxu0 0.0
  %1407 = vmatprep.subr.mxu0 0.0
  %1408 = vmatpush1.xpose.msra.mxu0 0.0
  %1409 = vmatprep.subr.mxu0 0.0
  %1410 = vmatpush1.xpose.msra.mxu0 0.0
  %1411 = vmatprep.subr.mxu0 0.0
  %1412 = vmatpush1.xpose.msra.mxu0 0.0
  %1413 = vmatprep.subr.mxu0 0.0
  %1414 = vmatpush1.xpose.msra.mxu0 0.0
  %1415 = vmatprep.subr.mxu0 0.0
  %1416 = vmatpush1.xpose.msra.mxu0 0.0
  %1417 = vmatprep.subr.mxu0 0.0
  %1418 = vmatpush1.xpose.msra.mxu0 0.0
  %1419 = vmatprep.subr.mxu0 0.0
  %1420 = vmatpush1.xpose.msra.mxu0 0.0
  %1421 = vmatprep.mubr.f32.mxu0 0.0
  %1422 = vmatmul.mubr.f32.gmra.mrb[0].mxu0 %v1353
  %v1423 = vpop.f32.mrb[0].mxu0
  %v1424 = vadd.f32 0.0, %v1423
  %v1425 = vpop.f32.mrb[0].mxu0
  %1426 = vdwg.mxu0
  %1428 = vrot.lane.b32.xlu0 %v1347, 96
  %v1429 = vpop.permute.xlu0 %1428
  %v1430 = vsel %vm197, %v1347, 0
  %v1432 = vsel %vm197, %v1429, 0
  %1434 = vmatprep.subr.mxu0 0.0
  %1435 = vmatpush1.xpose.msra.mxu0 %v1432
  %1436 = vmatprep.subr.mxu0 0.0
  %1437 = vmatpush1.xpose.msra.mxu0 0.0
  %1438 = vmatprep.subr.mxu0 0.0
  %1439 = vmatpush1.xpose.msra.mxu0 0.0
  %1440 = vmatprep.subr.mxu0 0.0
  %1441 = vmatpush1.xpose.msra.mxu0 0.0
  %1442 = vmatprep.subr.mxu0 0.0
  %1443 = vmatpush1.xpose.msra.mxu0 0.0
  %1444 = vmatprep.subr.mxu0 0.0
  %1445 = vmatpush1.xpose.msra.mxu0 0.0
  %1446 = vmatprep.subr.mxu0 0.0
  %1447 = vmatpush1.xpose.msra.mxu0 0.0
  %1448 = vmatprep.subr.mxu0 0.0
  %1449 = vmatpush1.xpose.msra.mxu0 0.0
  %1450 = vmatprep.subr.mxu0 0.0
  %1451 = vmatpush1.xpose.msra.mxu0 0.0
  %1452 = vmatprep.subr.mxu0 0.0
  %1453 = vmatpush1.xpose.msra.mxu0 0.0
  %1454 = vmatprep.subr.mxu0 0.0
  %1455 = vmatpush1.xpose.msra.mxu0 0.0
  %1456 = vmatprep.subr.mxu0 0.0
  %1457 = vmatpush1.xpose.msra.mxu0 0.0
  %1458 = vmatprep.subr.mxu0 0.0
  %1459 = vmatpush1.xpose.msra.mxu0 0.0
  %1460 = vmatprep.subr.mxu0 0.0
  %1461 = vmatpush1.xpose.msra.mxu0 0.0
  %1462 = vmatprep.subr.mxu0 0.0
  %1463 = vmatpush1.xpose.msra.mxu0 0.0
  %1464 = vmatprep.subr.mxu0 0.0
  %1465 = vmatpush1.xpose.msra.mxu0 0.0
  %1466 = vmatprep.subr.mxu0 0.0
  %1467 = vmatpush1.xpose.msra.mxu0 0.0
  %1468 = vmatprep.subr.mxu0 0.0
  %1469 = vmatpush1.xpose.msra.mxu0 0.0
  %1470 = vmatprep.subr.mxu0 0.0
  %1471 = vmatpush1.xpose.msra.mxu0 0.0
  %1472 = vmatprep.subr.mxu0 0.0
  %1473 = vmatpush1.xpose.msra.mxu0 0.0
  %1474 = vmatprep.subr.mxu0 0.0
  %1475 = vmatpush1.xpose.msra.mxu0 0.0
  %1476 = vmatprep.subr.mxu0 0.0
  %1477 = vmatpush1.xpose.msra.mxu0 0.0
  %1478 = vmatprep.subr.mxu0 0.0
  %1479 = vmatpush1.xpose.msra.mxu0 0.0
  %1480 = vmatprep.subr.mxu0 0.0
  %1481 = vmatpush1.xpose.msra.mxu0 0.0
  %1482 = vmatprep.subr.mxu0 0.0
  %1483 = vmatpush1.xpose.msra.mxu0 0.0
  %1484 = vmatprep.subr.mxu0 0.0
  %1485 = vmatpush1.xpose.msra.mxu0 0.0
  %1486 = vmatprep.subr.mxu0 0.0
  %1487 = vmatpush1.xpose.msra.mxu0 0.0
  %1488 = vmatprep.subr.mxu0 0.0
  %1489 = vmatpush1.xpose.msra.mxu0 0.0
  %1490 = vmatprep.subr.mxu0 0.0
  %1491 = vmatpush1.xpose.msra.mxu0 0.0
  %1492 = vmatprep.subr.mxu0 0.0
  %1493 = vmatpush1.xpose.msra.mxu0 0.0
  %1494 = vmatprep.subr.mxu0 0.0
  %1495 = vmatpush1.xpose.msra.mxu0 0.0
  %1496 = vmatprep.subr.mxu0 0.0
  %1497 = vmatpush1.xpose.msra.mxu0 0.0
  %1498 = vmatprep.mubr.f32.mxu0 0.0
  %1499 = vmatmul.mubr.f32.gmra.mrb[0].mxu0 %v1430
  %v1500 = vpop.f32.mrb[0].mxu0
  %v1501 = vadd.f32 0.0, %v1500
  %v1502 = vpop.f32.mrb[0].mxu0
  %1503 = vdwg.mxu0
  %v1504 = vmul.f32 %v1424, 0.25
  %v1505 = vmul.f32 %v1501, 0.25
  %v1506 = vadd.f32 %v1504, %v354
  %v1507 = vadd.f32 %v1505, %v358
  %v1508 = vsel %vm363, %v1506, -inf
  %1509 = vmax.xlane.f32.xlu0 %v1508
  %v1510 = vpop.xlane.xlu0 %1509
  %v1511 = vsel %vm363, %v1507, -inf
  %1512 = vmax.xlane.f32.xlu0 %v1511
  %v1513 = vpop.xlane.xlu0 %1512
  %v1514 = vsub.f32 %v1506, %v1510
  %v1515 = vsub.f32 %v1507, %v1513
  %v1516 = vmul.f32 %v1514, 1.442695
  %v1517 = vpow.pop %v1516
  %v1518 = vmul.f32 %v1515, 1.442695
  %v1519 = vpow.pop %v1518
  %v1520 = vsel %vm363, %v1517, 0.0
  %1521 = vadd.xlane.f32.xlu0 %v1520
  %v1522 = vpop.xlane.xlu0 %1521
  %v1523 = vsel %vm363, %v1519, 0.0
  %1524 = vadd.xlane.f32.xlu0 %v1523
  %v1525 = vpop.xlane.xlu0 %1524
  %v1526 = vrcp.pop %v1522
  %v1527 = vrcp.pop %v1525
  %v1528 = vmul.f32 %v1517, %v1526
  %v1529 = vmul.f32 %v1519, %v1527
  %1530 = vrot.lane.b32.xlu0 %v1342, 64
  %v1531 = vpop.permute.xlu0 %1530
  %v1534 = vsel %vm363, %v1528, 0
  %1536 = vmatprep.subr.mxu0 0.0
  %1537 = vmatpush1.msra.mxu0 %v1531
  %1538 = vmatprep.subr.mxu0 0.0
  %1539 = vmatpush1.msra.mxu0 0.0
  %1540 = vmatprep.subr.mxu0 0.0
  %1541 = vmatpush1.msra.mxu0 0.0
  %1542 = vmatprep.subr.mxu0 0.0
  %1543 = vmatpush1.msra.mxu0 0.0
  %1544 = vmatprep.subr.mxu0 0.0
  %1545 = vmatpush1.msra.mxu0 0.0
  %1546 = vmatprep.subr.mxu0 0.0
  %1547 = vmatpush1.msra.mxu0 0.0
  %1548 = vmatprep.subr.mxu0 0.0
  %1549 = vmatpush1.msra.mxu0 0.0
  %1550 = vmatprep.subr.mxu0 0.0
  %1551 = vmatpush1.msra.mxu0 0.0
  %1552 = vmatprep.subr.mxu0 0.0
  %1553 = vmatpush1.msra.mxu0 0.0
  %1554 = vmatprep.subr.mxu0 0.0
  %1555 = vmatpush1.msra.mxu0 0.0
  %1556 = vmatprep.subr.mxu0 0.0
  %1557 = vmatpush1.msra.mxu0 0.0
  %1558 = vmatprep.subr.mxu0 0.0
  %1559 = vmatpush1.msra.mxu0 0.0
  %1560 = vmatprep.subr.mxu0 0.0
  %1561 = vmatpush1.msra.mxu0 0.0
  %1562 = vmatprep.subr.mxu0 0.0
  %1563 = vmatpush1.msra.mxu0 0.0
  %1564 = vmatprep.subr.mxu0 0.0
  %1565 = vmatpush1.msra.mxu0 0.0
  %1566 = vmatprep.subr.mxu0 0.0
  %1567 = vmatpush1.msra.mxu0 0.0
  %1568 = vmatprep.subr.mxu0 0.0
  %1569 = vmatpush1.msra.mxu0 0.0
  %1570 = vmatprep.subr.mxu0 0.0
  %1571 = vmatpush1.msra.mxu0 0.0
  %1572 = vmatprep.subr.mxu0 0.0
  %1573 = vmatpush1.msra.mxu0 0.0
  %1574 = vmatprep.subr.mxu0 0.0
  %1575 = vmatpush1.msra.mxu0 0.0
  %1576 = vmatprep.subr.mxu0 0.0
  %1577 = vmatpush1.msra.mxu0 0.0
  %1578 = vmatprep.subr.mxu0 0.0
  %1579 = vmatpush1.msra.mxu0 0.0
  %1580 = vmatprep.subr.mxu0 0.0
  %1581 = vmatpush1.msra.mxu0 0.0
  %1582 = vmatprep.subr.mxu0 0.0
  %1583 = vmatpush1.msra.mxu0 0.0
  %1584 = vmatprep.subr.mxu0 0.0
  %1585 = vmatpush1.msra.mxu0 0.0
  %1586 = vmatprep.subr.mxu0 0.0
  %1587 = vmatpush1.msra.mxu0 0.0
  %1588 = vmatprep.subr.mxu0 0.0
  %1589 = vmatpush1.msra.mxu0 0.0
  %1590 = vmatprep.subr.mxu0 0.0
  %1591 = vmatpush1.msra.mxu0 0.0
  %1592 = vmatprep.subr.mxu0 0.0
  %1593 = vmatpush1.msra.mxu0 0.0
  %1594 = vmatprep.subr.mxu0 0.0
  %1595 = vmatpush1.msra.mxu0 0.0
  %1596 = vmatprep.subr.mxu0 0.0
  %1597 = vmatpush1.msra.mxu0 0.0
  %1598 = vmatprep.subr.mxu0 0.0
  %1599 = vmatpush1.msra.mxu0 0.0
  %1600 = vmatprep.mubr.f32.mxu0 0.0
  %1601 = vmatmul.mubr.f32.gmra.mrb[0].mxu0 %v1534
  %v1602 = vpop.f32.mrb[0].mxu0
  %v1603 = vadd.f32 0.0, %v1602
  %v1604 = vpop.f32.mrb[0].mxu0
  %1605 = vdwg.mxu0
  %1606 = vrot.lane.b32.xlu0 %v1347, 64
  %v1607 = vpop.permute.xlu0 %1606
  %v1610 = vsel %vm363, %v1529, 0
  %1612 = vmatprep.subr.mxu0 0.0
  %1613 = vmatpush1.msra.mxu0 %v1607
  %1614 = vmatprep.subr.mxu0 0.0
  %1615 = vmatpush1.msra.mxu0 0.0
  %1616 = vmatprep.subr.mxu0 0.0
  %1617 = vmatpush1.msra.mxu0 0.0
  %1618 = vmatprep.subr.mxu0 0.0
  %1619 = vmatpush1.msra.mxu0 0.0
  %1620 = vmatprep.subr.mxu0 0.0
  %1621 = vmatpush1.msra.mxu0 0.0
  %1622 = vmatprep.subr.mxu0 0.0
  %1623 = vmatpush1.msra.mxu0 0.0
  %1624 = vmatprep.subr.mxu0 0.0
  %1625 = vmatpush1.msra.mxu0 0.0
  %1626 = vmatprep.subr.mxu0 0.0
  %1627 = vmatpush1.msra.mxu0 0.0
  %1628 = vmatprep.subr.mxu0 0.0
  %1629 = vmatpush1.msra.mxu0 0.0
  %1630 = vmatprep.subr.mxu0 0.0
  %1631 = vmatpush1.msra.mxu0 0.0
  %1632 = vmatprep.subr.mxu0 0.0
  %1633 = vmatpush1.msra.mxu0 0.0
  %1634 = vmatprep.subr.mxu0 0.0
  %1635 = vmatpush1.msra.mxu0 0.0
  %1636 = vmatprep.subr.mxu0 0.0
  %1637 = vmatpush1.msra.mxu0 0.0
  %1638 = vmatprep.subr.mxu0 0.0
  %1639 = vmatpush1.msra.mxu0 0.0
  %1640 = vmatprep.subr.mxu0 0.0
  %1641 = vmatpush1.msra.mxu0 0.0
  %1642 = vmatprep.subr.mxu0 0.0
  %1643 = vmatpush1.msra.mxu0 0.0
  %1644 = vmatprep.subr.mxu0 0.0
  %1645 = vmatpush1.msra.mxu0 0.0
  %1646 = vmatprep.subr.mxu0 0.0
  %1647 = vmatpush1.msra.mxu0 0.0
  %1648 = vmatprep.subr.mxu0 0.0
  %1649 = vmatpush1.msra.mxu0 0.0
  %1650 = vmatprep.subr.mxu0 0.0
  %1651 = vmatpush1.msra.mxu0 0.0
  %1652 = vmatprep.subr.mxu0 0.0
  %1653 = vmatpush1.msra.mxu0 0.0
  %1654 = vmatprep.subr.mxu0 0.0
  %1655 = vmatpush1.msra.mxu0 0.0
  %1656 = vmatprep.subr.mxu0 0.0
  %1657 = vmatpush1.msra.mxu0 0.0
  %1658 = vmatprep.subr.mxu0 0.0
  %1659 = vmatpush1.msra.mxu0 0.0
  %1660 = vmatprep.subr.mxu0 0.0
  %1661 = vmatpush1.msra.mxu0 0.0
  %1662 = vmatprep.subr.mxu0 0.0
  %1663 = vmatpush1.msra.mxu0 0.0
  %1664 = vmatprep.subr.mxu0 0.0
  %1665 = vmatpush1.msra.mxu0 0.0
  %1666 = vmatprep.subr.mxu0 0.0
  %1667 = vmatpush1.msra.mxu0 0.0
  %1668 = vmatprep.subr.mxu0 0.0
  %1669 = vmatpush1.msra.mxu0 0.0
  %1670 = vmatprep.subr.mxu0 0.0
  %1671 = vmatpush1.msra.mxu0 0.0
  %1672 = vmatprep.subr.mxu0 0.0
  %1673 = vmatpush1.msra.mxu0 0.0
  %1674 = vmatprep.subr.mxu0 0.0
  %1675 = vmatpush1.msra.mxu0 0.0
  %1676 = vmatprep.mubr.f32.mxu0 0.0
  %1677 = vmatmul.mubr.f32.gmra.mrb[0].mxu0 %v1610
  %v1678 = vpop.f32.mrb[0].mxu0
  %v1679 = vadd.f32 0.0, %v1678
  %v1680 = vpop.f32.mrb[0].mxu0
  %1681 = vdwg.mxu0
  %1682 = vrot.lane.b32.xlu0 %v1342, 112
  %v1683 = vpop.permute.xlu0 %1682
  %1684 = vrot.lane.b32.xlu0 %v1342, 80
  %v1685 = vpop.permute.xlu0 %1684
  %v1686 = vsel %vm197, %v1683, 0
  %v1688 = vsel %vm197, %v1685, 0
  %1690 = vmatprep.subr.mxu0 0.0
  %1691 = vmatpush1.xpose.msra.mxu0 %v1688
  %1692 = vmatprep.subr.mxu0 0.0
  %1693 = vmatpush1.xpose.msra.mxu0 0.0
  %1694 = vmatprep.subr.mxu0 0.0
  %1695 = vmatpush1.xpose.msra.mxu0 0.0
  %1696 = vmatprep.subr.mxu0 0.0
  %1697 = vmatpush1.xpose.msra.mxu0 0.0
  %1698 = vmatprep.subr.mxu0 0.0
  %1699 = vmatpush1.xpose.msra.mxu0 0.0
  %1700 = vmatprep.subr.mxu0 0.0
  %1701 = vmatpush1.xpose.msra.mxu0 0.0
  %1702 = vmatprep.subr.mxu0 0.0
  %1703 = vmatpush1.xpose.msra.mxu0 0.0
  %1704 = vmatprep.subr.mxu0 0.0
  %1705 = vmatpush1.xpose.msra.mxu0 0.0
  %1706 = vmatprep.subr.mxu0 0.0
  %1707 = vmatpush1.xpose.msra.mxu0 0.0
  %1708 = vmatprep.subr.mxu0 0.0
  %1709 = vmatpush1.xpose.msra.mxu0 0.0
  %1710 = vmatprep.subr.mxu0 0.0
  %1711 = vmatpush1.xpose.msra.mxu0 0.0
  %1712 = vmatprep.subr.mxu0 0.0
  %1713 = vmatpush1.xpose.msra.mxu0 0.0
  %1714 = vmatprep.subr.mxu0 0.0
  %1715 = vmatpush1.xpose.msra.mxu0 0.0
  %1716 = vmatprep.subr.mxu0 0.0
  %1717 = vmatpush1.xpose.msra.mxu0 0.0
  %1718 = vmatprep.subr.mxu0 0.0
  %1719 = vmatpush1.xpose.msra.mxu0 0.0
  %1720 = vmatprep.subr.mxu0 0.0
  %1721 = vmatpush1.xpose.msra.mxu0 0.0
  %1722 = vmatprep.subr.mxu0 0.0
  %1723 = vmatpush1.xpose.msra.mxu0 0.0
  %1724 = vmatprep.subr.mxu0 0.0
  %1725 = vmatpush1.xpose.msra.mxu0 0.0
  %1726 = vmatprep.subr.mxu0 0.0
  %1727 = vmatpush1.xpose.msra.mxu0 0.0
  %1728 = vmatprep.subr.mxu0 0.0
  %1729 = vmatpush1.xpose.msra.mxu0 0.0
  %1730 = vmatprep.subr.mxu0 0.0
  %1731 = vmatpush1.xpose.msra.mxu0 0.0
  %1732 = vmatprep.subr.mxu0 0.0
  %1733 = vmatpush1.xpose.msra.mxu0 0.0
  %1734 = vmatprep.subr.mxu0 0.0
  %1735 = vmatpush1.xpose.msra.mxu0 0.0
  %1736 = vmatprep.subr.mxu0 0.0
  %1737 = vmatpush1.xpose.msra.mxu0 0.0
  %1738 = vmatprep.subr.mxu0 0.0
  %1739 = vmatpush1.xpose.msra.mxu0 0.0
  %1740 = vmatprep.subr.mxu0 0.0
  %1741 = vmatpush1.xpose.msra.mxu0 0.0
  %1742 = vmatprep.subr.mxu0 0.0
  %1743 = vmatpush1.xpose.msra.mxu0 0.0
  %1744 = vmatprep.subr.mxu0 0.0
  %1745 = vmatpush1.xpose.msra.mxu0 0.0
  %1746 = vmatprep.subr.mxu0 0.0
  %1747 = vmatpush1.xpose.msra.mxu0 0.0
  %1748 = vmatprep.subr.mxu0 0.0
  %1749 = vmatpush1.xpose.msra.mxu0 0.0
  %1750 = vmatprep.subr.mxu0 0.0
  %1751 = vmatpush1.xpose.msra.mxu0 0.0
  %1752 = vmatprep.subr.mxu0 0.0
  %1753 = vmatpush1.xpose.msra.mxu0 0.0
  %1754 = vmatprep.mubr.f32.mxu0 0.0
  %1755 = vmatmul.mubr.f32.gmra.mrb[0].mxu0 %v1686
  %v1756 = vpop.f32.mrb[0].mxu0
  %v1757 = vadd.f32 0.0, %v1756
  %v1758 = vpop.f32.mrb[0].mxu0
  %1759 = vdwg.mxu0
  %1760 = vrot.lane.b32.xlu0 %v1347, 112
  %v1761 = vpop.permute.xlu0 %1760
  %1762 = vrot.lane.b32.xlu0 %v1347, 80
  %v1763 = vpop.permute.xlu0 %1762
  %v1764 = vsel %vm197, %v1761, 0
  %v1766 = vsel %vm197, %v1763, 0
  %1768 = vmatprep.subr.mxu0 0.0
  %1769 = vmatpush1.xpose.msra.mxu0 %v1766
  %1770 = vmatprep.subr.mxu0 0.0
  %1771 = vmatpush1.xpose.msra.mxu0 0.0
  %1772 = vmatprep.subr.mxu0 0.0
  %1773 = vmatpush1.xpose.msra.mxu0 0.0
  %1774 = vmatprep.subr.mxu0 0.0
  %1775 = vmatpush1.xpose.msra.mxu0 0.0
  %1776 = vmatprep.subr.mxu0 0.0
  %1777 = vmatpush1.xpose.msra.mxu0 0.0
  %1778 = vmatprep.subr.mxu0 0.0
  %1779 = vmatpush1.xpose.msra.mxu0 0.0
  %1780 = vmatprep.subr.mxu0 0.0
  %1781 = vmatpush1.xpose.msra.mxu0 0.0
  %1782 = vmatprep.subr.mxu0 0.0
  %1783 = vmatpush1.xpose.msra.mxu0 0.0
  %1784 = vmatprep.subr.mxu0 0.0
  %1785 = vmatpush1.xpose.msra.mxu0 0.0
  %1786 = vmatprep.subr.mxu0 0.0
  %1787 = vmatpush1.xpose.msra.mxu0 0.0
  %1788 = vmatprep.subr.mxu0 0.0
  %1789 = vmatpush1.xpose.msra.mxu0 0.0
  %1790 = vmatprep.subr.mxu0 0.0
  %1791 = vmatpush1.xpose.msra.mxu0 0.0
  %1792 = vmatprep.subr.mxu0 0.0
  %1793 = vmatpush1.xpose.msra.mxu0 0.0
  %1794 = vmatprep.subr.mxu0 0.0
  %1795 = vmatpush1.xpose.msra.mxu0 0.0
  %1796 = vmatprep.subr.mxu0 0.0
  %1797 = vmatpush1.xpose.msra.mxu0 0.0
  %1798 = vmatprep.subr.mxu0 0.0
  %1799 = vmatpush1.xpose.msra.mxu0 0.0
  %1800 = vmatprep.subr.mxu0 0.0
  %1801 = vmatpush1.xpose.msra.mxu0 0.0
  %1802 = vmatprep.subr.mxu0 0.0
  %1803 = vmatpush1.xpose.msra.mxu0 0.0
  %1804 = vmatprep.subr.mxu0 0.0
  %1805 = vmatpush1.xpose.msra.mxu0 0.0
  %1806 = vmatprep.subr.mxu0 0.0
  %1807 = vmatpush1.xpose.msra.mxu0 0.0
  %1808 = vmatprep.subr.mxu0 0.0
  %1809 = vmatpush1.xpose.msra.mxu0 0.0
  %1810 = vmatprep.subr.mxu0 0.0
  %1811 = vmatpush1.xpose.msra.mxu0 0.0
  %1812 = vmatprep.subr.mxu0 0.0
  %1813 = vmatpush1.xpose.msra.mxu0 0.0
  %1814 = vmatprep.subr.mxu0 0.0
  %1815 = vmatpush1.xpose.msra.mxu0 0.0
  %1816 = vmatprep.subr.mxu0 0.0
  %1817 = vmatpush1.xpose.msra.mxu0 0.0
  %1818 = vmatprep.subr.mxu0 0.0
  %1819 = vmatpush1.xpose.msra.mxu0 0.0
  %1820 = vmatprep.subr.mxu0 0.0
  %1821 = vmatpush1.xpose.msra.mxu0 0.0
  %1822 = vmatprep.subr.mxu0 0.0
  %1823 = vmatpush1.xpose.msra.mxu0 0.0
  %1824 = vmatprep.subr.mxu0 0.0
  %1825 = vmatpush1.xpose.msra.mxu0 0.0
  %1826 = vmatprep.subr.mxu0 0.0
  %1827 = vmatpush1.xpose.msra.mxu0 0.0
  %1828 = vmatprep.subr.mxu0 0.0
  %1829 = vmatpush1.xpose.msra.mxu0 0.0
  %1830 = vmatprep.subr.mxu0 0.0
  %1831 = vmatpush1.xpose.msra.mxu0 0.0
  %1832 = vmatprep.mubr.f32.mxu0 0.0
  %1833 = vmatmul.mubr.f32.gmra.mrb[0].mxu0 %v1764
  %v1834 = vpop.f32.mrb[0].mxu0
  %v1835 = vadd.f32 0.0, %v1834
  %v1836 = vpop.f32.mrb[0].mxu0
  %1837 = vdwg.mxu0
  %v1838 = vmul.f32 %v1757, 0.25
  %v1839 = vmul.f32 %v1835, 0.25
  %v1840 = vadd.f32 %v1838, %v354
  %v1841 = vadd.f32 %v1839, %v358
  %v1842 = vsel %vm363, %v1840, -inf
  %1843 = vmax.xlane.f32.xlu0 %v1842
  %v1844 = vpop.xlane.xlu0 %1843
  %v1845 = vsel %vm363, %v1841, -inf
  %1846 = vmax.xlane.f32.xlu0 %v1845
  %v1847 = vpop.xlane.xlu0 %1846
  %v1848 = vsub.f32 %v1840, %v1844
  %v1849 = vsub.f32 %v1841, %v1847
  %v1850 = vmul.f32 %v1848, 1.442695
  %v1851 = vpow.pop %v1850
  %v1852 = vmul.f32 %v1849, 1.442695
  %v1853 = vpow.pop %v1852
  %v1854 = vsel %vm363, %v1851, 0.0
  %1855 = vadd.xlane.f32.xlu0 %v1854
  %v1856 = vpop.xlane.xlu0 %1855
  %v1857 = vsel %vm363, %v1853, 0.0
  %1858 = vadd.xlane.f32.xlu0 %v1857
  %v1859 = vpop.xlane.xlu0 %1858
  %v1860 = vrcp.pop %v1856
  %v1861 = vrcp.pop %v1859
  %v1862 = vmul.f32 %v1851, %v1860
  %v1863 = vmul.f32 %v1853, %v1861
  %1864 = vrot.lane.b32.xlu0 %v1342, 48
  %v1865 = vpop.permute.xlu0 %1864
  %v1868 = vsel %vm363, %v1862, 0
  %1870 = vmatprep.subr.mxu0 0.0
  %1871 = vmatpush1.msra.mxu0 %v1865
  %1872 = vmatprep.subr.mxu0 0.0
  %1873 = vmatpush1.msra.mxu0 0.0
  %1874 = vmatprep.subr.mxu0 0.0
  %1875 = vmatpush1.msra.mxu0 0.0
  %1876 = vmatprep.subr.mxu0 0.0
  %1877 = vmatpush1.msra.mxu0 0.0
  %1878 = vmatprep.subr.mxu0 0.0
  %1879 = vmatpush1.msra.mxu0 0.0
  %1880 = vmatprep.subr.mxu0 0.0
  %1881 = vmatpush1.msra.mxu0 0.0
  %1882 = vmatprep.subr.mxu0 0.0
  %1883 = vmatpush1.msra.mxu0 0.0
  %1884 = vmatprep.subr.mxu0 0.0
  %1885 = vmatpush1.msra.mxu0 0.0
  %1886 = vmatprep.subr.mxu0 0.0
  %1887 = vmatpush1.msra.mxu0 0.0
  %1888 = vmatprep.subr.mxu0 0.0
  %1889 = vmatpush1.msra.mxu0 0.0
  %1890 = vmatprep.subr.mxu0 0.0
  %1891 = vmatpush1.msra.mxu0 0.0
  %1892 = vmatprep.subr.mxu0 0.0
  %1893 = vmatpush1.msra.mxu0 0.0
  %1894 = vmatprep.subr.mxu0 0.0
  %1895 = vmatpush1.msra.mxu0 0.0
  %1896 = vmatprep.subr.mxu0 0.0
  %1897 = vmatpush1.msra.mxu0 0.0
  %1898 = vmatprep.subr.mxu0 0.0
  %1899 = vmatpush1.msra.mxu0 0.0
  %1900 = vmatprep.subr.mxu0 0.0
  %1901 = vmatpush1.msra.mxu0 0.0
  %1902 = vmatprep.subr.mxu0 0.0
  %1903 = vmatpush1.msra.mxu0 0.0
  %1904 = vmatprep.subr.mxu0 0.0
  %1905 = vmatpush1.msra.mxu0 0.0
  %1906 = vmatprep.subr.mxu0 0.0
  %1907 = vmatpush1.msra.mxu0 0.0
  %1908 = vmatprep.subr.mxu0 0.0
  %1909 = vmatpush1.msra.mxu0 0.0
  %1910 = vmatprep.subr.mxu0 0.0
  %1911 = vmatpush1.msra.mxu0 0.0
  %1912 = vmatprep.subr.mxu0 0.0
  %1913 = vmatpush1.msra.mxu0 0.0
  %1914 = vmatprep.subr.mxu0 0.0
  %1915 = vmatpush1.msra.mxu0 0.0
  %1916 = vmatprep.subr.mxu0 0.0
  %1917 = vmatpush1.msra.mxu0 0.0
  %1918 = vmatprep.subr.mxu0 0.0
  %1919 = vmatpush1.msra.mxu0 0.0
  %1920 = vmatprep.subr.mxu0 0.0
  %1921 = vmatpush1.msra.mxu0 0.0
  %1922 = vmatprep.subr.mxu0 0.0
  %1923 = vmatpush1.msra.mxu0 0.0
  %1924 = vmatprep.subr.mxu0 0.0
  %1925 = vmatpush1.msra.mxu0 0.0
  %1926 = vmatprep.subr.mxu0 0.0
  %1927 = vmatpush1.msra.mxu0 0.0
  %1928 = vmatprep.subr.mxu0 0.0
  %1929 = vmatpush1.msra.mxu0 0.0
  %1930 = vmatprep.subr.mxu0 0.0
  %1931 = vmatpush1.msra.mxu0 0.0
  %1932 = vmatprep.subr.mxu0 0.0
  %1933 = vmatpush1.msra.mxu0 0.0
  %1934 = vmatprep.mubr.f32.mxu0 0.0
  %1935 = vmatmul.mubr.f32.gmra.mrb[0].mxu0 %v1868
  %v1936 = vpop.f32.mrb[0].mxu0
  %v1937 = vadd.f32 0.0, %v1936
  %v1938 = vpop.f32.mrb[0].mxu0
  %1939 = vdwg.mxu0
  %1940 = vrot.lane.b32.xlu0 %v1347, 48
  %v1941 = vpop.permute.xlu0 %1940
  %v1944 = vsel %vm363, %v1863, 0
  %1946 = vmatprep.subr.mxu0 0.0
  %1947 = vmatpush1.msra.mxu0 %v1941
  %1948 = vmatprep.subr.mxu0 0.0
  %1949 = vmatpush1.msra.mxu0 0.0
  %1950 = vmatprep.subr.mxu0 0.0
  %1951 = vmatpush1.msra.mxu0 0.0
  %1952 = vmatprep.subr.mxu0 0.0
  %1953 = vmatpush1.msra.mxu0 0.0
  %1954 = vmatprep.subr.mxu0 0.0
  %1955 = vmatpush1.msra.mxu0 0.0
  %1956 = vmatprep.subr.mxu0 0.0
  %1957 = vmatpush1.msra.mxu0 0.0
  %1958 = vmatprep.subr.mxu0 0.0
  %1959 = vmatpush1.msra.mxu0 0.0
  %1960 = vmatprep.subr.mxu0 0.0
  %1961 = vmatpush1.msra.mxu0 0.0
  %1962 = vmatprep.subr.mxu0 0.0
  %1963 = vmatpush1.msra.mxu0 0.0
  %1964 = vmatprep.subr.mxu0 0.0
  %1965 = vmatpush1.msra.mxu0 0.0
  %1966 = vmatprep.subr.mxu0 0.0
  %1967 = vmatpush1.msra.mxu0 0.0
  %1968 = vmatprep.subr.mxu0 0.0
  %1969 = vmatpush1.msra.mxu0 0.0
  %1970 = vmatprep.subr.mxu0 0.0
  %1971 = vmatpush1.msra.mxu0 0.0
  %1972 = vmatprep.subr.mxu0 0.0
  %1973 = vmatpush1.msra.mxu0 0.0
  %1974 = vmatprep.subr.mxu0 0.0
  %1975 = vmatpush1.msra.mxu0 0.0
  %1976 = vmatprep.subr.mxu0 0.0
  %1977 = vmatpush1.msra.mxu0 0.0
  %1978 = vmatprep.subr.mxu0 0.0
  %1979 = vmatpush1.msra.mxu0 0.0
  %1980 = vmatprep.subr.mxu0 0.0
  %1981 = vmatpush1.msra.mxu0 0.0
  %1982 = vmatprep.subr.mxu0 0.0
  %1983 = vmatpush1.msra.mxu0 0.0
  %1984 = vmatprep.subr.mxu0 0.0
  %1985 = vmatpush1.msra.mxu0 0.0
  %1986 = vmatprep.subr.mxu0 0.0
  %1987 = vmatpush1.msra.mxu0 0.0
  %1988 = vmatprep.subr.mxu0 0.0
  %1989 = vmatpush1.msra.mxu0 0.0
  %1990 = vmatprep.subr.mxu0 0.0
  %1991 = vmatpush1.msra.mxu0 0.0
  %1992 = vmatprep.subr.mxu0 0.0
  %1993 = vmatpush1.msra.mxu0 0.0
  %1994 = vmatprep.subr.mxu0 0.0
  %1995 = vmatpush1.msra.mxu0 0.0
  %1996 = vmatprep.subr.mxu0 0.0
  %1997 = vmatpush1.msra.mxu0 0.0
  %1998 = vmatprep.subr.mxu0 0.0
  %1999 = vmatpush1.msra.mxu0 0.0
  %2000 = vmatprep.subr.mxu0 0.0
  %2001 = vmatpush1.msra.mxu0 0.0
  %2002 = vmatprep.subr.mxu0 0.0
  %2003 = vmatpush1.msra.mxu0 0.0
  %2004 = vmatprep.subr.mxu0 0.0
  %2005 = vmatpush1.msra.mxu0 0.0
  %2006 = vmatprep.subr.mxu0 0.0
  %2007 = vmatpush1.msra.mxu0 0.0
  %2008 = vmatprep.subr.mxu0 0.0
  %2009 = vmatpush1.msra.mxu0 0.0
  %2010 = vmatprep.mubr.f32.mxu0 0.0
  %2011 = vmatmul.mubr.f32.gmra.mrb[0].mxu0 %v1944
  %v2012 = vpop.f32.mrb[0].mxu0
  %v2013 = vadd.f32 0.0, %v2012
  %v2014 = vpop.f32.mrb[0].mxu0
  %2015 = vdwg.mxu0
  %2018 = vrot.lane.b32.xlu0 %v1937, 16
  %v2019 = vpop.permute.xlu0 %2018
  %2020 = vrot.lane.b32.xlu0 %v2013, 16
  %v2021 = vpop.permute.xlu0 %2020
  %v2024 = vsel %vm197, %v1603, %v2019
  %v2025 = vsel %vm197, %v1679, %v2021
  %s2026 = scalar_lea.vmem %s3, 32
  %v2027 = vld [vmem:[%s2026] sm:$0xff]
  %v2028 = vld [vmem:[%s2026 + $0x8] sm:$0xff]
  %v2029 = vld [vmem:[%s2026 + $0x10] sm:$0xff]
  %v2030 = vld [vmem:[%s2026 + $0x18] sm:$0xff]
  %v2031 = vlaneseq
  %v2032 = vshrl.u32 %v2031, 7
  %v2033 = vsub.s32 0, %v2032
  %v2034 = vrot.slane %v1253, %v2033
  %v2036 = vsel %vm33, %v2024, 0
  %v2039 = vsel %vm33, %v2025, 0
  %2041 = vmatprep.subr.mxu0 0.0
  %2042 = vmatpush1.msra.mxu0 %v2027
  %2043 = vmatprep.subr.mxu0 0.0
  %2044 = vmatpush1.msra.mxu0 %v2028
  %2045 = vmatprep.subr.mxu0 0.0
  %2046 = vmatpush1.msra.mxu0 %v2029
  %2047 = vmatprep.subr.mxu0 0.0
  %2048 = vmatpush1.msra.mxu0 %v2030
  %2049 = vmatprep.subr.mxu0 0.0
  %2050 = vmatpush1.msra.mxu0 0.0
  %2051 = vmatprep.subr.mxu0 0.0
  %2052 = vmatpush1.msra.mxu0 0.0
  %2053 = vmatprep.subr.mxu0 0.0
  %2054 = vmatpush1.msra.mxu0 0.0
  %2055 = vmatprep.subr.mxu0 0.0
  %2056 = vmatpush1.msra.mxu0 0.0
  %2057 = vmatprep.subr.mxu0 0.0
  %2058 = vmatpush1.msra.mxu0 0.0
  %2059 = vmatprep.subr.mxu0 0.0
  %2060 = vmatpush1.msra.mxu0 0.0
  %2061 = vmatprep.subr.mxu0 0.0
  %2062 = vmatpush1.msra.mxu0 0.0
  %2063 = vmatprep.subr.mxu0 0.0
  %2064 = vmatpush1.msra.mxu0 0.0
  %2065 = vmatprep.subr.mxu0 0.0
  %2066 = vmatpush1.msra.mxu0 0.0
  %2067 = vmatprep.subr.mxu0 0.0
  %2068 = vmatpush1.msra.mxu0 0.0
  %2069 = vmatprep.subr.mxu0 0.0
  %2070 = vmatpush1.msra.mxu0 0.0
  %2071 = vmatprep.subr.mxu0 0.0
  %2072 = vmatpush1.msra.mxu0 0.0
  %2073 = vmatprep.subr.mxu0 0.0
  %2074 = vmatpush1.msra.mxu0 0.0
  %2075 = vmatprep.subr.mxu0 0.0
  %2076 = vmatpush1.msra.mxu0 0.0
  %2077 = vmatprep.subr.mxu0 0.0
  %2078 = vmatpush1.msra.mxu0 0.0
  %2079 = vmatprep.subr.mxu0 0.0
  %2080 = vmatpush1.msra.mxu0 0.0
  %2081 = vmatprep.subr.mxu0 0.0
  %2082 = vmatpush1.msra.mxu0 0.0
  %2083 = vmatprep.subr.mxu0 0.0
  %2084 = vmatpush1.msra.mxu0 0.0
  %2085 = vmatprep.subr.mxu0 0.0
  %2086 = vmatpush1.msra.mxu0 0.0
  %2087 = vmatprep.subr.mxu0 0.0
  %2088 = vmatpush1.msra.mxu0 0.0
  %2089 = vmatprep.subr.mxu0 0.0
  %2090 = vmatpush1.msra.mxu0 0.0
  %2091 = vmatprep.subr.mxu0 0.0
  %2092 = vmatpush1.msra.mxu0 0.0
  %2093 = vmatprep.subr.mxu0 0.0
  %2094 = vmatpush1.msra.mxu0 0.0
  %2095 = vmatprep.subr.mxu0 0.0
  %2096 = vmatpush1.msra.mxu0 0.0
  %2097 = vmatprep.subr.mxu0 0.0
  %2098 = vmatpush1.msra.mxu0 0.0
  %2099 = vmatprep.subr.mxu0 0.0
  %2100 = vmatpush1.msra.mxu0 0.0
  %2101 = vmatprep.subr.mxu0 0.0
  %2102 = vmatpush1.msra.mxu0 0.0
  %2103 = vmatprep.subr.mxu0 0.0
  %2104 = vmatpush1.msra.mxu0 0.0
  %2105 = vmatprep.mubr.f32.mxu0 0.0
  %2106 = vmatmul.mubr.f32.gmra.mrb[0].mxu0 %v2036
  %v2107 = vpop.f32.mrb[0].mxu0
  %v2108 = vadd.f32 %v2034, %v2107
  %v2109 = vpop.f32.mrb[0].mxu0
  %2110 = vmatprep.mubr.f32.mxu0 0.0
  %2111 = vmatmul.mubr.f32.gmra.mrb[0].mxu0 %v2039
  %v2112 = vpop.f32.mrb[0].mxu0
  %v2113 = vadd.f32 %v2034, %v2112
  %v2114 = vpop.f32.mrb[0].mxu0
  %2115 = vdwg.mxu0
  %v2116 = vadd.f32 %v1250, %v2108
  %v2117 = vadd.f32 %v1251, %v2113
  %v2118 = vsel %vm33, %v2116, 0.0
  %2119 = vadd.xlane.f32.xlu0 %v2118
  %v2120 = vpop.xlane.xlu0 %2119
  %v2121 = vsel %vm33, %v2117, 0.0
  %2122 = vadd.xlane.f32.xlu0 %v2121
  %v2123 = vpop.xlane.xlu0 %2122
  %v2124 = vmul.f32 %v2120, %v40
  %v2125 = vmul.f32 %v2123, %v40
  %v2126 = vsub.f32 %v2116, %v2124
  %v2127 = vsub.f32 %v2117, %v2125
  %v2128 = vmul.f32 %v2126, %v2126
  %v2129 = vmul.f32 %v2127, %v2127
  %v2130 = vsel %vm33, %v2128, 0.0
  %2131 = vadd.xlane.f32.xlu0 %v2130
  %v2132 = vpop.xlane.xlu0 %2131
  %v2133 = vsel %vm33, %v2129, 0.0
  %2134 = vadd.xlane.f32.xlu0 %v2133
  %v2135 = vpop.xlane.xlu0 %2134
  %v2136 = vmul.f32 %v2132, %v40
  %v2137 = vmul.f32 %v2135, %v40
  %v2138 = vadd.f32 %v2136, 1e-12
  %v2139 = vadd.f32 %v2137, 1e-12
  %v2140 = vrsqrt.pop %v2138
  %v2141 = vrsqrt.pop %v2139
  %v2142 = vmul.f32 %v2126, %v2140
  %v2143 = vmul.f32 %v2127, %v2141
  %v2144 = vlaneseq
  %v2145 = vshrl.u32 %v2144, 7
  %v2146 = vsub.s32 0, %v2145
  %v2147 = vrot.slane %v1254, %v2146
  %v2148 = vmul.f32 %v2142, %v2147
  %v2149 = vmul.f32 %v2143, %v2147
  %v2150 = vlaneseq
  %v2151 = vshrl.u32 %v2150, 7
  %v2152 = vsub.s32 0, %v2151
  %v2153 = vrot.slane %v1255, %v2152
  %v2154 = vadd.f32 %v2148, %v2153
  %v2155 = vadd.f32 %v2149, %v2153
  %s2156 = scalar_lea.vmem %s4, 32
  %v2157 = vld [vmem:[%s2156] sm:$0xff]
  %v2158 = vld [vmem:[%s2156 + $0x8] sm:$0xff]
  %v2159 = vld [vmem:[%s2156 + $0x10] sm:$0xff]
  %v2160 = vld [vmem:[%s2156 + $0x18] sm:$0xff]
  %v2161 = vlaneseq
  %v2162 = vshrl.u32 %v2161, 7
  %v2163 = vsub.s32 0, %v2162
  %v2164 = vrot.slane %v1256, %v2163
  %v2166 = vsel %vm33, %v2154, 0
  %v2169 = vsel %vm33, %v2155, 0
  %2171 = vmatprep.subr.mxu0 0.0
  %2172 = vmatpush1.msra.mxu0 %v2157
  %2173 = vmatprep.subr.mxu0 0.0
  %2174 = vmatpush1.msra.mxu0 %v2158
  %2175 = vmatprep.subr.mxu0 0.0
  %2176 = vmatpush1.msra.mxu0 %v2159
  %2177 = vmatprep.subr.mxu0 0.0
  %2178 = vmatpush1.msra.mxu0 %v2160
  %2179 = vmatprep.subr.mxu0 0.0
  %2180 = vmatpush1.msra.mxu0 0.0
  %2181 = vmatprep.subr.mxu0 0.0
  %2182 = vmatpush1.msra.mxu0 0.0
  %2183 = vmatprep.subr.mxu0 0.0
  %2184 = vmatpush1.msra.mxu0 0.0
  %2185 = vmatprep.subr.mxu0 0.0
  %2186 = vmatpush1.msra.mxu0 0.0
  %2187 = vmatprep.subr.mxu0 0.0
  %2188 = vmatpush1.msra.mxu0 0.0
  %2189 = vmatprep.subr.mxu0 0.0
  %2190 = vmatpush1.msra.mxu0 0.0
  %2191 = vmatprep.subr.mxu0 0.0
  %2192 = vmatpush1.msra.mxu0 0.0
  %2193 = vmatprep.subr.mxu0 0.0
  %2194 = vmatpush1.msra.mxu0 0.0
  %2195 = vmatprep.subr.mxu0 0.0
  %2196 = vmatpush1.msra.mxu0 0.0
  %2197 = vmatprep.subr.mxu0 0.0
  %2198 = vmatpush1.msra.mxu0 0.0
  %2199 = vmatprep.subr.mxu0 0.0
  %2200 = vmatpush1.msra.mxu0 0.0
  %2201 = vmatprep.subr.mxu0 0.0
  %2202 = vmatpush1.msra.mxu0 0.0
  %2203 = vmatprep.subr.mxu0 0.0
  %2204 = vmatpush1.msra.mxu0 0.0
  %2205 = vmatprep.subr.mxu0 0.0
  %2206 = vmatpush1.msra.mxu0 0.0
  %2207 = vmatprep.subr.mxu0 0.0
  %2208 = vmatpush1.msra.mxu0 0.0
  %2209 = vmatprep.subr.mxu0 0.0
  %2210 = vmatpush1.msra.mxu0 0.0
  %2211 = vmatprep.subr.mxu0 0.0
  %2212 = vmatpush1.msra.mxu0 0.0
  %2213 = vmatprep.subr.mxu0 0.0
  %2214 = vmatpush1.msra.mxu0 0.0
  %2215 = vmatprep.subr.mxu0 0.0
  %2216 = vmatpush1.msra.mxu0 0.0
  %2217 = vmatprep.subr.mxu0 0.0
  %2218 = vmatpush1.msra.mxu0 0.0
  %2219 = vmatprep.subr.mxu0 0.0
  %2220 = vmatpush1.msra.mxu0 0.0
  %2221 = vmatprep.subr.mxu0 0.0
  %2222 = vmatpush1.msra.mxu0 0.0
  %2223 = vmatprep.subr.mxu0 0.0
  %2224 = vmatpush1.msra.mxu0 0.0
  %2225 = vmatprep.subr.mxu0 0.0
  %2226 = vmatpush1.msra.mxu0 0.0
  %2227 = vmatprep.subr.mxu0 0.0
  %2228 = vmatpush1.msra.mxu0 0.0
  %2229 = vmatprep.subr.mxu0 0.0
  %2230 = vmatpush1.msra.mxu0 0.0
  %2231 = vmatprep.subr.mxu0 0.0
  %2232 = vmatpush1.msra.mxu0 0.0
  %2233 = vmatprep.subr.mxu0 0.0
  %2234 = vmatpush1.msra.mxu0 0.0
  %2235 = vmatprep.mubr.f32.mxu0 0.0
  %2236 = vmatmul.mubr.f32.gmra.mrb[0].mxu0 %v2166
  %v2237 = vpop.f32.mrb[0].mxu0
  %v2238 = vadd.f32 %v2164, %v2237
  %v2239 = vpop.f32.mrb[0].mxu0
  %2240 = vmatprep.mubr.f32.mxu0 0.0
  %2241 = vmatmul.mubr.f32.gmra.mrb[0].mxu0 %v2169
  %v2242 = vpop.f32.mrb[0].mxu0
  %v2243 = vadd.f32 %v2164, %v2242
  %v2244 = vpop.f32.mrb[0].mxu0
  %2245 = vdwg.mxu0
  %v2246 = vmul.f32 %v2238, %v2238
  %v2247 = vmul.f32 %v2243, %v2243
  %v2248 = vmul.f32 %v2238, %v2246
  %v2249 = vmul.f32 %v2243, %v2247
  %v2250 = vmul.f32 %v2248, 0.044715
  %v2251 = vmul.f32 %v2249, 0.044715
  %v2252 = vadd.f32 %v2238, %v2250
  %v2253 = vadd.f32 %v2243, %v2251
  %v2254 = vmul.f32 %v2252, 0.7978846
  %v2255 = vmul.f32 %v2253, 0.7978846
  %v2256 = vtanh.pop %v2254
  %v2257 = vtanh.pop %v2255
  %v2258 = vadd.f32 %v2256, 1.0
  %v2259 = vadd.f32 %v2257, 1.0
  %v2260 = vmul.f32 %v2258, 0.5
  %v2261 = vmul.f32 %v2259, 0.5
  %v2262 = vmul.f32 %v2238, %v2260
  %v2263 = vmul.f32 %v2243, %v2261
  %s2264 = scalar_lea.vmem %s5, 64
  %v2265 = vld [vmem:[%s2264] sm:$0xff]
  %v2266 = vld [vmem:[%s2264 + $0x8] sm:$0xff]
  %v2267 = vld [vmem:[%s2264 + $0x10] sm:$0xff]
  %v2268 = vld [vmem:[%s2264 + $0x18] sm:$0xff]
  %v2269 = vld [vmem:[%s2264 + $0x20] sm:$0xff]
  %v2270 = vld [vmem:[%s2264 + $0x28] sm:$0xff]
  %v2271 = vld [vmem:[%s2264 + $0x30] sm:$0xff]
  %v2272 = vld [vmem:[%s2264 + $0x38] sm:$0xff]
  %v2273 = vlaneseq
  %v2274 = vshrl.u32 %v2273, 7
  %v2275 = vsub.s32 0, %v2274
  %v2276 = vrot.slane %v1257, %v2275
  %v2278 = vsel %vm1130, %v2262, 0
  %v2281 = vsel %vm1130, %v2263, 0
  %2283 = vmatprep.subr.mxu0 0.0
  %2284 = vmatpush1.msra.mxu0 %v2265
  %2285 = vmatprep.subr.mxu0 0.0
  %2286 = vmatpush1.msra.mxu0 %v2266
  %2287 = vmatprep.subr.mxu0 0.0
  %2288 = vmatpush1.msra.mxu0 %v2267
  %2289 = vmatprep.subr.mxu0 0.0
  %2290 = vmatpush1.msra.mxu0 %v2268
  %2291 = vmatprep.subr.mxu0 0.0
  %2292 = vmatpush1.msra.mxu0 %v2269
  %2293 = vmatprep.subr.mxu0 0.0
  %2294 = vmatpush1.msra.mxu0 %v2270
  %2295 = vmatprep.subr.mxu0 0.0
  %2296 = vmatpush1.msra.mxu0 %v2271
  %2297 = vmatprep.subr.mxu0 0.0
  %2298 = vmatpush1.msra.mxu0 %v2272
  %2299 = vmatprep.subr.mxu0 0.0
  %2300 = vmatpush1.msra.mxu0 0.0
  %2301 = vmatprep.subr.mxu0 0.0
  %2302 = vmatpush1.msra.mxu0 0.0
  %2303 = vmatprep.subr.mxu0 0.0
  %2304 = vmatpush1.msra.mxu0 0.0
  %2305 = vmatprep.subr.mxu0 0.0
  %2306 = vmatpush1.msra.mxu0 0.0
  %2307 = vmatprep.subr.mxu0 0.0
  %2308 = vmatpush1.msra.mxu0 0.0
  %2309 = vmatprep.subr.mxu0 0.0
  %2310 = vmatpush1.msra.mxu0 0.0
  %2311 = vmatprep.subr.mxu0 0.0
  %2312 = vmatpush1.msra.mxu0 0.0
  %2313 = vmatprep.subr.mxu0 0.0
  %2314 = vmatpush1.msra.mxu0 0.0
  %2315 = vmatprep.subr.mxu0 0.0
  %2316 = vmatpush1.msra.mxu0 0.0
  %2317 = vmatprep.subr.mxu0 0.0
  %2318 = vmatpush1.msra.mxu0 0.0
  %2319 = vmatprep.subr.mxu0 0.0
  %2320 = vmatpush1.msra.mxu0 0.0
  %2321 = vmatprep.subr.mxu0 0.0
  %2322 = vmatpush1.msra.mxu0 0.0
  %2323 = vmatprep.subr.mxu0 0.0
  %2324 = vmatpush1.msra.mxu0 0.0
  %2325 = vmatprep.subr.mxu0 0.0
  %2326 = vmatpush1.msra.mxu0 0.0
  %2327 = vmatprep.subr.mxu0 0.0
  %2328 = vmatpush1.msra.mxu0 0.0
  %2329 = vmatprep.subr.mxu0 0.0
  %2330 = vmatpush1.msra.mxu0 0.0
  %2331 = vmatprep.subr.mxu0 0.0
  %2332 = vmatpush1.msra.mxu0 0.0
  %2333 = vmatprep.subr.mxu0 0.0
  %2334 = vmatpush1.msra.mxu0 0.0
  %2335 = vmatprep.subr.mxu0 0.0
  %2336 = vmatpush1.msra.mxu0 0.0
  %2337 = vmatprep.subr.mxu0 0.0
  %2338 = vmatpush1.msra.mxu0 0.0
  %2339 = vmatprep.subr.mxu0 0.0
  %2340 = vmatpush1.msra.mxu0 0.0
  %2341 = vmatprep.subr.mxu0 0.0
  %2342 = vmatpush1.msra.mxu0 0.0
  %2343 = vmatprep.subr.mxu0 0.0
  %2344 = vmatpush1.msra.mxu0 0.0
  %2345 = vmatprep.subr.mxu0 0.0
  %2346 = vmatpush1.msra.mxu0 0.0
  %2347 = vmatprep.mubr.f32.mxu0 0.0
  %2348 = vmatmul.mubr.f32.gmra.mrb[0].mxu0 %v2278
  %v2349 = vpop.f32.mrb[0].mxu0
  %v2350 = vadd.f32 %v2276, %v2349
  %v2351 = vpop.f32.mrb[0].mxu0
  %2352 = vmatprep.mubr.f32.mxu0 0.0
  %2353 = vmatmul.mubr.f32.gmra.mrb[0].mxu0 %v2281
  %v2354 = vpop.f32.mrb[0].mxu0
  %v2355 = vadd.f32 %v2276, %v2354
  %v2356 = vpop.f32.mrb[0].mxu0
  %2357 = vdwg.mxu0
  %v2358 = vadd.f32 %v2154, %v2350
  %v2359 = vadd.f32 %v2155, %v2355
  %v2360 = vsel %vm33, %v2358, 0.0
  %2361 = vadd.xlane.f32.xlu0 %v2360
  %v2362 = vpop.xlane.xlu0 %2361
  %v2363 = vsel %vm33, %v2359, 0.0
  %2364 = vadd.xlane.f32.xlu0 %v2363
  %v2365 = vpop.xlane.xlu0 %2364
  %v2366 = vmul.f32 %v2362, %v40
  %v2367 = vmul.f32 %v2365, %v40
  %v2368 = vsub.f32 %v2358, %v2366
  %v2369 = vsub.f32 %v2359, %v2367
  %v2370 = vmul.f32 %v2368, %v2368
  %v2371 = vmul.f32 %v2369, %v2369
  %v2372 = vsel %vm33, %v2370, 0.0
  %2373 = vadd.xlane.f32.xlu0 %v2372
  %v2374 = vpop.xlane.xlu0 %2373
  %v2375 = vsel %vm33, %v2371, 0.0
  %2376 = vadd.xlane.f32.xlu0 %v2375
  %v2377 = vpop.xlane.xlu0 %2376
  %v2378 = vmul.f32 %v2374, %v40
  %v2379 = vmul.f32 %v2377, %v40
  %v2380 = vadd.f32 %v2378, 1e-12
  %v2381 = vadd.f32 %v2379, 1e-12
  %v2382 = vrsqrt.pop %v2380
  %v2383 = vrsqrt.pop %v2381
  %v2384 = vmul.f32 %v2368, %v2382
  %v2385 = vmul.f32 %v2369, %v2383
  %v2386 = vlaneseq
  %v2387 = vshrl.u32 %v2386, 7
  %v2388 = vsub.s32 0, %v2387
  %v2389 = vrot.slane %v1258, %v2388
  %v2390 = vmul.f32 %v2384, %v2389
  %v2391 = vmul.f32 %v2385, %v2389
  %v2392 = vlaneseq
  %v2393 = vshrl.u32 %v2392, 7
  %v2394 = vsub.s32 0, %v2393
  %v2395 = vrot.slane %v1259, %v2394
  %v2396 = vadd.f32 %v2390, %v2395
  %v2397 = vadd.f32 %v2391, %v2395
  %v2398 = vld [vmem:[%s7 + $0x12] sm:$0x1]
  %v2399 = vld [vmem:[%s7 + $0x13] sm:$0x1]
  %v2400 = vld [vmem:[%s7 + $0x14] sm:$0x1]
  %v2401 = vld [vmem:[%s6] sm:$0xff]
  %v2402 = vld [vmem:[%s6 + $0x8] sm:$0xff]
  %v2403 = vld [vmem:[%s6 + $0x10] sm:$0xff]
  %v2404 = vld [vmem:[%s6 + $0x18] sm:$0xff]
  %v2405 = vlaneseq
  %v2406 = vshrl.u32 %v2405, 7
  %v2407 = vsub.s32 0, %v2406
  %v2408 = vrot.slane %v2398, %v2407
  %v2411 = vrot.slane %v2397, 7
  %vm2412 = vcmask 1041409
  %v2413 = vsel %vm2412, %v2411, %v2396
  %v2414 = vsel %vm33, %v2413, 0
  %2416 = vmatprep.subr.mxu0 0.0
  %2417 = vmatpush1.msra.mxu0 %v2401
  %2418 = vmatprep.subr.mxu0 0.0
  %2419 = vmatpush1.msra.mxu0 %v2402
  %2420 = vmatprep.subr.mxu0 0.0
  %2421 = vmatpush1.msra.mxu0 %v2403
  %2422 = vmatprep.subr.mxu0 0.0
  %2423 = vmatpush1.msra.mxu0 %v2404
  %2424 = vmatprep.subr.mxu0 0.0
  %2425 = vmatpush1.msra.mxu0 0.0
  %2426 = vmatprep.subr.mxu0 0.0
  %2427 = vmatpush1.msra.mxu0 0.0
  %2428 = vmatprep.subr.mxu0 0.0
  %2429 = vmatpush1.msra.mxu0 0.0
  %2430 = vmatprep.subr.mxu0 0.0
  %2431 = vmatpush1.msra.mxu0 0.0
  %2432 = vmatprep.subr.mxu0 0.0
  %2433 = vmatpush1.msra.mxu0 0.0
  %2434 = vmatprep.subr.mxu0 0.0
  %2435 = vmatpush1.msra.mxu0 0.0
  %2436 = vmatprep.subr.mxu0 0.0
  %2437 = vmatpush1.msra.mxu0 0.0
  %2438 = vmatprep.subr.mxu0 0.0
  %2439 = vmatpush1.msra.mxu0 0.0
  %2440 = vmatprep.subr.mxu0 0.0
  %2441 = vmatpush1.msra.mxu0 0.0
  %2442 = vmatprep.subr.mxu0 0.0
  %2443 = vmatpush1.msra.mxu0 0.0
  %2444 = vmatprep.subr.mxu0 0.0
  %2445 = vmatpush1.msra.mxu0 0.0
  %2446 = vmatprep.subr.mxu0 0.0
  %2447 = vmatpush1.msra.mxu0 0.0
  %2448 = vmatprep.subr.mxu0 0.0
  %2449 = vmatpush1.msra.mxu0 0.0
  %2450 = vmatprep.subr.mxu0 0.0
  %2451 = vmatpush1.msra.mxu0 0.0
  %2452 = vmatprep.subr.mxu0 0.0
  %2453 = vmatpush1.msra.mxu0 0.0
  %2454 = vmatprep.subr.mxu0 0.0
  %2455 = vmatpush1.msra.mxu0 0.0
  %2456 = vmatprep.subr.mxu0 0.0
  %2457 = vmatpush1.msra.mxu0 0.0
  %2458 = vmatprep.subr.mxu0 0.0
  %2459 = vmatpush1.msra.mxu0 0.0
  %2460 = vmatprep.subr.mxu0 0.0
  %2461 = vmatpush1.msra.mxu0 0.0
  %2462 = vmatprep.subr.mxu0 0.0
  %2463 = vmatpush1.msra.mxu0 0.0
  %2464 = vmatprep.subr.mxu0 0.0
  %2465 = vmatpush1.msra.mxu0 0.0
  %2466 = vmatprep.subr.mxu0 0.0
  %2467 = vmatpush1.msra.mxu0 0.0
  %2468 = vmatprep.subr.mxu0 0.0
  %2469 = vmatpush1.msra.mxu0 0.0
  %2470 = vmatprep.subr.mxu0 0.0
  %2471 = vmatpush1.msra.mxu0 0.0
  %2472 = vmatprep.subr.mxu0 0.0
  %2473 = vmatpush1.msra.mxu0 0.0
  %2474 = vmatprep.subr.mxu0 0.0
  %2475 = vmatpush1.msra.mxu0 0.0
  %2476 = vmatprep.subr.mxu0 0.0
  %2477 = vmatpush1.msra.mxu0 0.0
  %2478 = vmatprep.subr.mxu0 0.0
  %2479 = vmatpush1.msra.mxu0 0.0
  %2480 = vmatprep.mubr.f32.mxu0 0.0
  %2481 = vmatmul.mubr.f32.gmra.mrb[0].mxu0 %v2414
  %v2482 = vpop.f32.mrb[0].mxu0
  %v2483 = vadd.f32 %v2408, %v2482
  %v2484 = vpop.f32.mrb[0].mxu0
  %2485 = vdwg.mxu0
  %v2486 = vtanh.pop %v2483
  %v2487 = vlaneseq
  %v2488 = vshrl.u32 %v2487, 7
  %v2489 = vsub.s32 0, %v2488
  %v2490 = vrot.slane %v2399, %v2489
  %v2491 = vmul.f32 %v2486, %v2490
  %vm2492 = vcmask 254976
  %v2493 = vsel %vm2492, %v2491, 0.0
  %2494 = vadd.xlane.f32.xlu0 %v2493
  %v2495 = vpop.xlane.xlu0 %2494
  %v2496 = vlaneseq
  %v2497 = vshrl.u32 %v2496, 7
  %v2498 = vsub.s32 0, %v2497
  %v2499 = vrot.slane %v2400, %v2498
  %v2500 = vadd.f32 %v2495, %v2499
  %vm2501 = vcmask 1024
  %2502 = vst.msk [vmem:[%s8] sm:$0x3] %vm2501, %v2500
  // Predicated region
  $region34: #{bert_detector_forward.1} parent=0 // pred_check
    _
  $region35: #{bert_detector_forward.1} parent=0 // pred_check_branch
    %2504 = sbr.rel (0) target = $region37
  $region36: #{bert_detector_forward.1} parent=0 // pred_region
    _
  $region37: #{bert_detector_forward.1} parent=0 // pred_fallthru
    _
  // Predicated region
  $region38: #{bert_detector_forward.1} parent=0 // pred_check
    _
  $region39: #{bert_detector_forward.1} parent=0 // pred_check_branch
    %2506 = sbr.rel (0) target = $region41
  $region40: #{bert_detector_forward.1} parent=0 // pred_region
    _
  $region41: #{bert_detector_forward.1} parent=0 // pred_fallthru
    _

</llo_original>
